<compile_context>
chip_gen: v7x
topology: tpu7x:2x2x1
jax: 0.10.0
libtpu: 0.0.40
codegen_flags: <defaults>
</compile_context>

<pallas_src>
import functools

import jax
import jax.numpy as jnp
from jax.experimental import pallas as pl
from jax.experimental.pallas import tpu as pltpu


# ---------------------------------------------------------------------------
# Fused multi-step decoder kernel: embedding gather + n_layers LSTM cells + tiled FC
# grid = (T, NO)   T = decode steps, NO = vocab tiles of the FC
# ---------------------------------------------------------------------------
def _make_decoder_kernel(n_layers):
    def kernel(*refs):
        # ---- inputs -------------------------------------------------------
        ids_ref, emb_ref, h0_ref, c0_ref = refs[0:4]          # (B,1) i32, (V,E) bf16, (L,B,H) f32 x2
        w_refs = refs[4:4 + n_layers]                         # per layer (D_in+H, 4H) bf16
        b_refs = refs[4 + n_layers:4 + 2 * n_layers]          # per layer (1, 4H) f32
        fc_w_ref, fc_b_ref = refs[4 + 2 * n_layers:6 + 2 * n_layers]   # (H,TILE_O) bf16, (1,TILE_O) f32
        # ---- outputs / scratch --------------------------------------------
        logits_ref, h_out_ref, c_out_ref, h_top_ref = refs[6 + 2 * n_layers:]

        t = pl.program_id(0)
        o_idx = pl.program_id(1)

        B = ids_ref.shape[0]
        V = emb_ref.shape[0]
        H = h0_ref.shape[-1]

        # Seed the resident VMEM state (constant-index-map outputs) from the incoming
        # hidden/cell exactly once, at the very first grid point.
        @pl.when(jnp.logical_and(t == 0, o_idx == 0))
        def _():
            h_out_ref[...] = h0_ref[...]
            c_out_ref[...] = c0_ref[...]

        # Recurrent state update: once per decode step (first vocab tile only).
        @pl.when(o_idx == 0)
        def _():
            # Fused embedding gather: one-hot (bf16) @ table (bf16) -> exact bf16 rows.
            ids = ids_ref[...]                                            # (B, 1) int32
            onehot = (jax.lax.broadcasted_iota(jnp.int32, (B, V), 1) == ids
                      ).astype(jnp.bfloat16)                              # (B, V)
            x = jnp.dot(onehot, emb_ref[...],
                        preferred_element_type=jnp.float32
                        ).astype(jnp.bfloat16)                            # (B, E) bf16

            # Statically unrolled layer loop; activations never leave VMEM/vregs.
            for l in range(n_layers):
                h_prev = h_out_ref[l]                                     # (B, H) f32 (resident)
                c_prev = c_out_ref[l]                                     # (B, H) f32 (resident)
                # xh built directly in bf16 (no f32 concat round trip).
                xh = jnp.concatenate([x, h_prev.astype(jnp.bfloat16)], axis=-1)
                gates = (
                    jnp.dot(xh, w_refs[l][...],
                            preferred_element_type=jnp.float32)           # 1 MXU matmul / layer
                    + b_refs[l][...]
                )                                                         # (B, 4H) f32
                i_g = jax.nn.sigmoid(gates[:, 0 * H:1 * H])
                f_g = jax.nn.sigmoid(gates[:, 1 * H:2 * H])
                g_g = jnp.tanh(gates[:, 2 * H:3 * H])
                o_g = jax.nn.sigmoid(gates[:, 3 * H:4 * H])
                c_new = f_g * c_prev + i_g * g_g
                h_new = o_g * jnp.tanh(c_new)
                h_out_ref[l] = h_new
                c_out_ref[l] = c_new
                x = h_new.astype(jnp.bfloat16)                            # feeds next layer

            h_top_ref[...] = x                                            # (B, H) bf16 scratch

        # Tiled FC projection: one lane block of the vocab per grid point on axis 1.
        logits_ref[...] = (
            jnp.dot(h_top_ref[...], fc_w_ref[...],
                    preferred_element_type=jnp.float32)
            + fc_b_ref[...]
        )

    return kernel


# ---------------------------------------------------------------------------
# Multi-step (teacher-forced) decode: T steps in ONE pallas_call, weights resident.
# ---------------------------------------------------------------------------
def decoder_forward_multistep(params, token_seq, hidden, cell, *, tile_o=128):
    """
    token_seq: (T, B) int32 token ids (teacher-forced inputs, one per step)
    hidden, cell: (n_layers, B, H) f32
    returns: logits (T, B, O) f32, hidden (n_layers, B, H) f32, cell (n_layers, B, H) f32
    """
    T, B = token_seq.shape
    n_layers, _, H = hidden.shape
    V, E = params["embedding"].shape
    O = params["fc_w"].shape[-1]

    TILE_O = min(tile_o, O)
    assert O % TILE_O == 0, "vocab must be a multiple of the FC tile"
    NO = O // TILE_O

    ids3 = token_seq.reshape(T, B, 1).astype(jnp.int32)

    const2 = lambda t, o: (0, 0)
    const3 = lambda t, o: (0, 0, 0)

    in_specs = [
        pl.BlockSpec((None, B, 1), lambda t, o: (t, 0, 0)),        # token ids (per step)
        pl.BlockSpec((V, E), const2),                              # embedding (resident)
        pl.BlockSpec((n_layers, B, H), const3),                    # h0 (fetched once)
        pl.BlockSpec((n_layers, B, H), const3),                    # c0 (fetched once)
    ]
    in_specs += [pl.BlockSpec(params[f"w_{l}"].shape, const2) for l in range(n_layers)]
    in_specs += [pl.BlockSpec((1, 4 * H), const2) for _ in range(n_layers)]
    in_specs += [
        pl.BlockSpec((H, TILE_O), lambda t, o: (0, o)),            # fc_w (vocab-tiled)
        pl.BlockSpec((1, TILE_O), lambda t, o: (0, o)),            # fc_b (vocab-tiled)
    ]
    out_specs = (
        pl.BlockSpec((None, B, TILE_O), lambda t, o: (t, 0, o)),   # logits per (step, vocab tile)
        pl.BlockSpec((n_layers, B, H), const3),                    # h state (resident accumulator)
        pl.BlockSpec((n_layers, B, H), const3),                    # c state (resident accumulator)
    )

    inputs = [ids3, params["embedding"], hidden, cell]
    inputs += [params[f"w_{l}"] for l in range(n_layers)]
    inputs += [params[f"b_{l}"] for l in range(n_layers)]
    inputs += [params["fc_w"], params["fc_b"]]

    logits, new_h, new_c = pl.pallas_call(
        _make_decoder_kernel(n_layers),
        grid=(T, NO),
        out_shape=(
            jax.ShapeDtypeStruct((T, B, O), jnp.float32),
            jax.ShapeDtypeStruct((n_layers, B, H), jnp.float32),
            jax.ShapeDtypeStruct((n_layers, B, H), jnp.float32),
        ),
        in_specs=in_specs,
        out_specs=out_specs,
        scratch_shapes=[pltpu.VMEM((B, H), jnp.bfloat16)],         # top-layer hidden for FC tiles
        # new state written in place over the incoming hidden/cell buffers
        input_output_aliases={2: 1, 3: 2},
        compiler_params=pltpu.CompilerParams(
            # vocab tiles depend on the o==0 state update of the same step -> arbitrary
            dimension_semantics=("arbitrary", "arbitrary"),
            vmem_limit_bytes=32 * 1024 * 1024,                     # > v5e's 16 MiB default scope
        ),
    )(*inputs)
    return logits, new_h, new_c


# ---------------------------------------------------------------------------
# Single-step forward: matches PyTorch Decoder.forward semantics (eval mode)
# ---------------------------------------------------------------------------
def decoder_forward(params, input_tokens, hidden, cell):
    """
    input_tokens: (B,) int32 token ids    (PyTorch: input_, then unsqueeze(0))
    hidden, cell: (n_layers, B, H) f32
    returns: logits (B, O) f32, hidden, cell
    """
    logits, new_h, new_c = decoder_forward_multistep(
        params, input_tokens.reshape(1, -1), hidden, cell)
    return logits[0], new_h, new_c


# ---------------------------------------------------------------------------
# Pure-JAX reference (mirrors the kernel's bf16 matmul-input rounding)
# ---------------------------------------------------------------------------
def decoder_forward_ref(params, input_tokens, hidden, cell):
    n_layers, _, H = hidden.shape
    x = params["embedding"][input_tokens].astype(jnp.float32)
    new_h, new_c = [], []
    for l in range(n_layers):
        xh = jnp.concatenate([x, hidden[l]], axis=-1)
        xh = xh.astype(jnp.bfloat16).astype(jnp.float32)      # mirror bf16 matmul inputs
        w = params[f"w_{l}"].astype(jnp.float32)
        gates = xh @ w + params[f"b_{l}"]
        i = jax.nn.sigmoid(gates[:, 0 * H:1 * H])
        f = jax.nn.sigmoid(gates[:, 1 * H:2 * H])
        g = jnp.tanh(gates[:, 2 * H:3 * H])
        o = jax.nn.sigmoid(gates[:, 3 * H:4 * H])
        c_l = f * cell[l] + i * g
        h_l = o * jnp.tanh(c_l)
        new_h.append(h_l)
        new_c.append(c_l)
        x = h_l
    xb = x.astype(jnp.bfloat16).astype(jnp.float32)
    logits = xb @ params["fc_w"].astype(jnp.float32) + params["fc_b"]
    return logits, jnp.stack(new_h, 0), jnp.stack(new_c, 0)


# ---------------------------------------------------------------------------
# Deterministic parameter init (pre-transposed / pre-concatenated / pre-summed)
# ---------------------------------------------------------------------------
def init_params(key, output_dim, emb_dim, hid_dim, n_layers):
    keys = jax.random.split(key, 3 + 4 * n_layers)
    params = {
        "embedding": (jax.random.normal(keys[0], (output_dim, emb_dim), jnp.float32)
                      * 0.1).astype(jnp.bfloat16),
        # fc.weight is (O, H) in PyTorch -> stored pre-transposed as (H, O)
        "fc_w": (jax.random.normal(keys[1], (hid_dim, output_dim), jnp.float32)
                 * 0.1).astype(jnp.bfloat16),
        "fc_b": (jax.random.normal(keys[2], (output_dim,), jnp.float32)
                 * 0.1).reshape(1, output_dim),
    }
    kidx = 3
    for l in range(n_layers):
        in_dim = emb_dim if l == 0 else hid_dim
        # PyTorch layout: w_ih (4H, D_in), w_hh (4H, H), gate order i,f,g,o
        w_ih = jax.random.normal(keys[kidx + 0], (4 * hid_dim, in_dim), jnp.float32) * 0.1
        w_hh = jax.random.normal(keys[kidx + 1], (4 * hid_dim, hid_dim), jnp.float32) * 0.1
        b_ih = jax.random.normal(keys[kidx + 2], (4 * hid_dim,), jnp.float32) * 0.1
        b_hh = jax.random.normal(keys[kidx + 3], (4 * hid_dim,), jnp.float32) * 0.1
        # done ONCE at init, never per step:
        params[f"w_{l}"] = jnp.concatenate([w_ih.T, w_hh.T], axis=0).astype(jnp.bfloat16)
        params[f"b_{l}"] = (b_ih + b_hh).reshape(1, 4 * hid_dim)
        kidx += 4
    return params


if __name__ == "__main__":
    # lane-dense toy sizes: H, E multiples of 128; vocab multiple of 128; B=16 fills bf16 vregs
    output_dim, emb_dim, hid_dim, n_layers = 256, 128, 128, 2
    batch = 16
    T = 4

    key = jax.random.PRNGKey(0)
    k_param, k_tok, k_h, k_c = jax.random.split(key, 4)

    params = init_params(k_param, output_dim, emb_dim, hid_dim, n_layers)
    token_seq = jax.random.randint(k_tok, (T, batch), 0, output_dim, dtype=jnp.int32)
    hidden = jax.random.normal(k_h, (n_layers, batch, hid_dim), jnp.float32)
    cell = jax.random.normal(k_c, (n_layers, batch, hid_dim), jnp.float32)

    # ---- references (run before the donated kernel call consumes the state buffers) ----
    ref_logits0, ref_h0, ref_c0 = decoder_forward_ref(params, token_seq[0], hidden, cell)

    h_r, c_r = hidden, cell
    ref_seq = []
    for t in range(T):
        lt, h_r, c_r = decoder_forward_ref(params, token_seq[t], h_r, c_r)
        ref_seq.append(lt)
    ref_seq = jnp.stack(ref_seq, 0)

    # ---- fused multi-step decode (weights DMA'd once, state resident in VMEM) ----
    multi = jax.jit(functools.partial(decoder_forward_multistep, tile_o=128))
    logits_seq, h_T, c_T = jax.block_until_ready(multi(params, token_seq, hidden, cell))

    assert logits_seq.shape == (T, batch, output_dim)
    assert h_T.shape == (n_layers, batch, hid_dim)
    assert c_T.shape == (n_layers, batch, hid_dim)
    assert jnp.allclose(logits_seq, ref_seq, atol=2e-3), float(jnp.abs(logits_seq - ref_seq).max())
    assert jnp.allclose(h_T, h_r, atol=2e-3), float(jnp.abs(h_T - h_r).max())
    assert jnp.allclose(c_T, c_r, atol=2e-3), float(jnp.abs(c_T - c_r).max())

    # ---- single-step forward (module semantics); donate state so aliasing is in-place ----
    step = jax.jit(decoder_forward, donate_argnums=(2, 3))
    logits, new_hidden, new_cell = jax.block_until_ready(
        step(params, token_seq[0], hidden, cell)
    )

    assert logits.shape == (batch, output_dim)
    assert new_hidden.shape == (n_layers, batch, hid_dim)
    assert new_cell.shape == (n_layers, batch, hid_dim)
    assert jnp.allclose(logits, ref_logits0, atol=2e-3), float(jnp.abs(logits - ref_logits0).max())
    assert jnp.allclose(new_hidden, ref_h0, atol=2e-3), float(jnp.abs(new_hidden - ref_h0).max())
    assert jnp.allclose(new_cell, ref_c0, atol=2e-3), float(jnp.abs(new_cell - ref_c0).max())

    print("KERNEL_OK")
</pallas_src>

<mosaic_0001>
module attributes {stable_mosaic.version = 11 : i64} {
  func.func @kernel(%arg0: i32, %arg1: i32, %arg2: memref<1x16x1xi32, #tpu.memory_space<vmem>>, %arg3: memref<256x128xbf16, #tpu.memory_space<vmem>>, %arg4: memref<2x16x128xf32, #tpu.memory_space<vmem>>, %arg5: memref<2x16x128xf32, #tpu.memory_space<vmem>>, %arg6: memref<256x512xbf16, #tpu.memory_space<vmem>>, %arg7: memref<256x512xbf16, #tpu.memory_space<vmem>>, %arg8: memref<1x512xf32, #tpu.memory_space<vmem>>, %arg9: memref<1x512xf32, #tpu.memory_space<vmem>>, %arg10: memref<128x128xbf16, #tpu.memory_space<vmem>>, %arg11: memref<1x128xf32, #tpu.memory_space<vmem>>, %arg12: memref<1x16x128xf32, #tpu.memory_space<vmem>>, %arg13: memref<2x16x128xf32, #tpu.memory_space<vmem>>, %arg14: memref<2x16x128xf32, #tpu.memory_space<vmem>>, %arg15: memref<16x128xbf16, #tpu.memory_space<vmem>>) attributes {dimension_semantics = [#tpu.dimension_semantics<arbitrary>, #tpu.dimension_semantics<arbitrary>], iteration_bounds = array<i64: 4, 2>, scalar_prefetch = 0 : i64, scratch_operands = 1 : i64, tpu.core_type = #tpu.core_type<tc>, window_params = [{transform_indices = @transform_0, window_bounds = array<i64: 1, 16, 1>}, {pipeline_mode = #tpu.pipeline_mode<synchronous>, transform_indices = @transform_1, window_bounds = array<i64: 256, 128>}, {pipeline_mode = #tpu.pipeline_mode<synchronous>, transform_indices = @transform_2, window_bounds = array<i64: 2, 16, 128>}, {pipeline_mode = #tpu.pipeline_mode<synchronous>, transform_indices = @transform_3, window_bounds = array<i64: 2, 16, 128>}, {pipeline_mode = #tpu.pipeline_mode<synchronous>, transform_indices = @transform_4, window_bounds = array<i64: 256, 512>}, {pipeline_mode = #tpu.pipeline_mode<synchronous>, transform_indices = @transform_5, window_bounds = array<i64: 256, 512>}, {pipeline_mode = #tpu.pipeline_mode<synchronous>, transform_indices = @transform_6, window_bounds = array<i64: 1, 512>}, {pipeline_mode = #tpu.pipeline_mode<synchronous>, transform_indices = @transform_7, window_bounds = array<i64: 1, 512>}, {transform_indices = @transform_8, window_bounds = array<i64: 128, 128>}, {transform_indices = @transform_9, window_bounds = array<i64: 1, 128>}, {transform_indices = @transform_10, window_bounds = array<i64: 1, 16, 128>}, {pipeline_mode = #tpu.pipeline_mode<synchronous>, transform_indices = @transform_11, window_bounds = array<i64: 2, 16, 128>}, {pipeline_mode = #tpu.pipeline_mode<synchronous>, transform_indices = @transform_12, window_bounds = array<i64: 2, 16, 128>}]} {
    %c0_i32 = arith.constant 0 : i32
    %0 = arith.cmpi eq, %arg0, %c0_i32 : i32
    %c0_i32_0 = arith.constant 0 : i32
    %1 = arith.cmpi eq, %arg1, %c0_i32_0 : i32
    %2 = arith.andi %0, %1 : i1
    %3 = arith.extui %2 : i1 to i32
    %c0_i32_1 = arith.constant 0 : i32
    %4 = arith.cmpi ne, %3, %c0_i32_1 : i32
    scf.if %4 {
      %c0_12 = arith.constant 0 : index
      %c0_13 = arith.constant 0 : index
      %c0_14 = arith.constant 0 : index
      %17 = vector.load %arg4[%c0_12, %c0_13, %c0_14] : memref<2x16x128xf32, #tpu.memory_space<vmem>>, vector<2x16x128xf32>
      %c0_15 = arith.constant 0 : index
      %c0_16 = arith.constant 0 : index
      %c0_17 = arith.constant 0 : index
      %18 = vector.load %arg13[%c0_15, %c0_16, %c0_17] : memref<2x16x128xf32, #tpu.memory_space<vmem>>, vector<2x16x128xf32>
      tpu.vector_store %arg13[%c0_15, %c0_16, %c0_17], %17 {strides = array<i32>} : memref<2x16x128xf32, #tpu.memory_space<vmem>>, vector<2x16x128xf32>,
      %c0_18 = arith.constant 0 : index
      %c0_19 = arith.constant 0 : index
      %c0_20 = arith.constant 0 : index
      %19 = vector.load %arg5[%c0_18, %c0_19, %c0_20] : memref<2x16x128xf32, #tpu.memory_space<vmem>>, vector<2x16x128xf32>
      %c0_21 = arith.constant 0 : index
      %c0_22 = arith.constant 0 : index
      %c0_23 = arith.constant 0 : index
      %20 = vector.load %arg14[%c0_21, %c0_22, %c0_23] : memref<2x16x128xf32, #tpu.memory_space<vmem>>, vector<2x16x128xf32>
      tpu.vector_store %arg14[%c0_21, %c0_22, %c0_23], %19 {strides = array<i32>} : memref<2x16x128xf32, #tpu.memory_space<vmem>>, vector<2x16x128xf32>,
    } else {
    }
    %c0_i32_2 = arith.constant 0 : i32
    %5 = arith.cmpi eq, %arg1, %c0_i32_2 : i32
    %6 = arith.extui %5 : i1 to i32
    %c0_i32_3 = arith.constant 0 : i32
    %7 = arith.cmpi ne, %6, %c0_i32_3 : i32
    scf.if %7 {
      %c0_12 = arith.constant 0 : index
      %c0_13 = arith.constant 0 : index
      %c0_14 = arith.constant 0 : index
      %17 = vector.load %arg2[%c0_12, %c0_13, %c0_14] : memref<1x16x1xi32, #tpu.memory_space<vmem>>, vector<1x16x1xi32>
      %18 = vector.shape_cast %17 : vector<1x16x1xi32> to vector<16x1xi32>
      %19 = tpu.iota {dimensions = array<i32: 1>} : vector<16x256xi32>
      %20 = vector.broadcast %18 : vector<16x1xi32> to vector<16x256xi32>
      %21 = arith.cmpi eq, %19, %20 : vector<16x256xi32>
      %22 = arith.extui %21 : vector<16x256xi1> to vector<16x256xi32>
      %23 = arith.sitofp %22 : vector<16x256xi32> to vector<16x256xf32>
      %24 = arith.truncf %23 : vector<16x256xf32> to vector<16x256xbf16>
      %c0_15 = arith.constant 0 : index
      %c0_16 = arith.constant 0 : index
      %25 = vector.load %arg3[%c0_15, %c0_16] : memref<256x128xbf16, #tpu.memory_space<vmem>>, vector<256x128xbf16>
      %cst_17 = arith.constant dense<0.000000e+00> : vector<16x128xf32>
      %26 = tpu.matmul %24, %25, %cst_17 {dimension_numbers = #tpu.dot_dimension_numbers<[1], [0], [0], [1], [0, 0, 1, 1], [], []>} : vector<16x256xbf16>, vector<256x128xbf16>, vector<16x128xf32> -> vector<16x128xf32>
      %27 = arith.truncf %26 : vector<16x128xf32> to vector<16x128xbf16>
      %c0_18 = arith.constant 0 : index
      %c0_19 = arith.constant 0 : index
      %c0_20 = arith.constant 0 : index
      %28 = vector.load %arg13[%c0_18, %c0_19, %c0_20] : memref<2x16x128xf32, #tpu.memory_space<vmem>>, vector<1x16x128xf32>
      %29 = vector.shape_cast %28 : vector<1x16x128xf32> to vector<16x128xf32>
      %c0_21 = arith.constant 0 : index
      %c0_22 = arith.constant 0 : index
      %c0_23 = arith.constant 0 : index
      %30 = vector.load %arg14[%c0_21, %c0_22, %c0_23] : memref<2x16x128xf32, #tpu.memory_space<vmem>>, vector<1x16x128xf32>
      %31 = vector.shape_cast %30 : vector<1x16x128xf32> to vector<16x128xf32>
      %32 = arith.truncf %29 : vector<16x128xf32> to vector<16x128xbf16>
      %33 = tpu.concatenate %27, %32 in 1 : vector<16x128xbf16>, vector<16x128xbf16> -> vector<16x256xbf16>
      %c0_24 = arith.constant 0 : index
      %c0_25 = arith.constant 0 : index
      %34 = vector.load %arg6[%c0_24, %c0_25] : memref<256x512xbf16, #tpu.memory_space<vmem>>, vector<256x512xbf16>
      %cst_26 = arith.constant dense<0.000000e+00> : vector<16x512xf32>
      %35 = tpu.matmul %33, %34, %cst_26 {dimension_numbers = #tpu.dot_dimension_numbers<[1], [0], [0], [1], [0, 0, 1, 1], [], []>} : vector<16x256xbf16>, vector<256x512xbf16>, vector<16x512xf32> -> vector<16x512xf32>
      %c0_27 = arith.constant 0 : index
      %c0_28 = arith.constant 0 : index
      %36 = vector.load %arg8[%c0_27, %c0_28] : memref<1x512xf32, #tpu.memory_space<vmem>>, vector<1x512xf32>
      %37 = vector.broadcast %36 : vector<1x512xf32> to vector<16x512xf32>
      %38 = arith.addf %35, %37 : vector<16x512xf32>
      %39 = vector.extract_strided_slice %38 {offsets = [0, 0], sizes = [16, 128], strides = [1, 1]} : vector<16x512xf32> to vector<16x128xf32>
      %40 = arith.negf %39 : vector<16x128xf32>
      %41 = math.exp %40 : vector<16x128xf32>
      %cst_29 = arith.constant 1.000000e+00 : f32
      %42 = vector.broadcast %cst_29 : f32 to vector<16x128xf32>
      %43 = arith.addf %42, %41 : vector<16x128xf32>
      %44 = arith.divf %42, %43 : vector<16x128xf32>
      %45 = vector.extract_strided_slice %38 {offsets = [0, 128], sizes = [16, 128], strides = [1, 1]} : vector<16x512xf32> to vector<16x128xf32>
      %46 = arith.negf %45 : vector<16x128xf32>
      %47 = math.exp %46 : vector<16x128xf32>
      %cst_30 = arith.constant 1.000000e+00 : f32
      %48 = vector.broadcast %cst_30 : f32 to vector<16x128xf32>
      %49 = arith.addf %48, %47 : vector<16x128xf32>
      %50 = arith.divf %48, %49 : vector<16x128xf32>
      %51 = vector.extract_strided_slice %38 {offsets = [0, 256], sizes = [16, 128], strides = [1, 1]} : vector<16x512xf32> to vector<16x128xf32>
      %52 = math.tanh %51 : vector<16x128xf32>
      %53 = vector.extract_strided_slice %38 {offsets = [0, 384], sizes = [16, 128], strides = [1, 1]} : vector<16x512xf32> to vector<16x128xf32>
      %54 = arith.negf %53 : vector<16x128xf32>
      %55 = math.exp %54 : vector<16x128xf32>
      %cst_31 = arith.constant 1.000000e+00 : f32
      %56 = vector.broadcast %cst_31 : f32 to vector<16x128xf32>
      %57 = arith.addf %56, %55 : vector<16x128xf32>
      %58 = arith.divf %56, %57 : vector<16x128xf32>
      %59 = arith.mulf %50, %31 : vector<16x128xf32>
      %60 = arith.mulf %44, %52 : vector<16x128xf32>
      %61 = arith.addf %59, %60 : vector<16x128xf32>
      %62 = math.tanh %61 : vector<16x128xf32>
      %63 = arith.mulf %58, %62 : vector<16x128xf32>
      %c0_32 = arith.constant 0 : index
      %c0_33 = arith.constant 0 : index
      %c0_34 = arith.constant 0 : index
      %64 = vector.load %arg13[%c0_32, %c0_33, %c0_34] : memref<2x16x128xf32, #tpu.memory_space<vmem>>, vector<1x16x128xf32>
      %65 = vector.shape_cast %64 : vector<1x16x128xf32> to vector<16x128xf32>
      %66 = vector.shape_cast %63 : vector<16x128xf32> to vector<1x16x128xf32>
      tpu.vector_store %arg13[%c0_32, %c0_33, %c0_34], %66 {strides = array<i32>} : memref<2x16x128xf32, #tpu.memory_space<vmem>>, vector<1x16x128xf32>,
      %c0_35 = arith.constant 0 : index
      %c0_36 = arith.constant 0 : index
      %c0_37 = arith.constant 0 : index
      %67 = vector.load %arg14[%c0_35, %c0_36, %c0_37] : memref<2x16x128xf32, #tpu.memory_space<vmem>>, vector<1x16x128xf32>
      %68 = vector.shape_cast %67 : vector<1x16x128xf32> to vector<16x128xf32>
      %69 = vector.shape_cast %61 : vector<16x128xf32> to vector<1x16x128xf32>
      tpu.vector_store %arg14[%c0_35, %c0_36, %c0_37], %69 {strides = array<i32>} : memref<2x16x128xf32, #tpu.memory_space<vmem>>, vector<1x16x128xf32>,
      %70 = arith.truncf %63 : vector<16x128xf32> to vector<16x128xbf16>
      %c1 = arith.constant 1 : index
      %c0_38 = arith.constant 0 : index
      %c0_39 = arith.constant 0 : index
      %71 = vector.load %arg13[%c1, %c0_38, %c0_39] : memref<2x16x128xf32, #tpu.memory_space<vmem>>, vector<1x16x128xf32>
      %72 = vector.shape_cast %71 : vector<1x16x128xf32> to vector<16x128xf32>
      %c1_40 = arith.constant 1 : index
      %c0_41 = arith.constant 0 : index
      %c0_42 = arith.constant 0 : index
      %73 = vector.load %arg14[%c1_40, %c0_41, %c0_42] : memref<2x16x128xf32, #tpu.memory_space<vmem>>, vector<1x16x128xf32>
      %74 = vector.shape_cast %73 : vector<1x16x128xf32> to vector<16x128xf32>
      %75 = arith.truncf %72 : vector<16x128xf32> to vector<16x128xbf16>
      %76 = tpu.concatenate %70, %75 in 1 : vector<16x128xbf16>, vector<16x128xbf16> -> vector<16x256xbf16>
      %c0_43 = arith.constant 0 : index
      %c0_44 = arith.constant 0 : index
      %77 = vector.load %arg7[%c0_43, %c0_44] : memref<256x512xbf16, #tpu.memory_space<vmem>>, vector<256x512xbf16>
      %cst_45 = arith.constant dense<0.000000e+00> : vector<16x512xf32>
      %78 = tpu.matmul %76, %77, %cst_45 {dimension_numbers = #tpu.dot_dimension_numbers<[1], [0], [0], [1], [0, 0, 1, 1], [], []>} : vector<16x256xbf16>, vector<256x512xbf16>, vector<16x512xf32> -> vector<16x512xf32>
      %c0_46 = arith.constant 0 : index
      %c0_47 = arith.constant 0 : index
      %79 = vector.load %arg9[%c0_46, %c0_47] : memref<1x512xf32, #tpu.memory_space<vmem>>, vector<1x512xf32>
      %80 = vector.broadcast %79 : vector<1x512xf32> to vector<16x512xf32>
      %81 = arith.addf %78, %80 : vector<16x512xf32>
      %82 = vector.extract_strided_slice %81 {offsets = [0, 0], sizes = [16, 128], strides = [1, 1]} : vector<16x512xf32> to vector<16x128xf32>
      %83 = arith.negf %82 : vector<16x128xf32>
      %84 = math.exp %83 : vector<16x128xf32>
      %cst_48 = arith.constant 1.000000e+00 : f32
      %85 = vector.broadcast %cst_48 : f32 to vector<16x128xf32>
      %86 = arith.addf %85, %84 : vector<16x128xf32>
      %87 = arith.divf %85, %86 : vector<16x128xf32>
      %88 = vector.extract_strided_slice %81 {offsets = [0, 128], sizes = [16, 128], strides = [1, 1]} : vector<16x512xf32> to vector<16x128xf32>
      %89 = arith.negf %88 : vector<16x128xf32>
      %90 = math.exp %89 : vector<16x128xf32>
      %cst_49 = arith.constant 1.000000e+00 : f32
      %91 = vector.broadcast %cst_49 : f32 to vector<16x128xf32>
      %92 = arith.addf %91, %90 : vector<16x128xf32>
      %93 = arith.divf %91, %92 : vector<16x128xf32>
      %94 = vector.extract_strided_slice %81 {offsets = [0, 256], sizes = [16, 128], strides = [1, 1]} : vector<16x512xf32> to vector<16x128xf32>
      %95 = math.tanh %94 : vector<16x128xf32>
      %96 = vector.extract_strided_slice %81 {offsets = [0, 384], sizes = [16, 128], strides = [1, 1]} : vector<16x512xf32> to vector<16x128xf32>
      %97 = arith.negf %96 : vector<16x128xf32>
      %98 = math.exp %97 : vector<16x128xf32>
      %cst_50 = arith.constant 1.000000e+00 : f32
      %99 = vector.broadcast %cst_50 : f32 to vector<16x128xf32>
      %100 = arith.addf %99, %98 : vector<16x128xf32>
      %101 = arith.divf %99, %100 : vector<16x128xf32>
      %102 = arith.mulf %93, %74 : vector<16x128xf32>
      %103 = arith.mulf %87, %95 : vector<16x128xf32>
      %104 = arith.addf %102, %103 : vector<16x128xf32>
      %105 = math.tanh %104 : vector<16x128xf32>
      %106 = arith.mulf %101, %105 : vector<16x128xf32>
      %c1_51 = arith.constant 1 : index
      %c0_52 = arith.constant 0 : index
      %c0_53 = arith.constant 0 : index
      %107 = vector.load %arg13[%c1_51, %c0_52, %c0_53] : memref<2x16x128xf32, #tpu.memory_space<vmem>>, vector<1x16x128xf32>
      %108 = vector.shape_cast %107 : vector<1x16x128xf32> to vector<16x128xf32>
      %109 = vector.shape_cast %106 : vector<16x128xf32> to vector<1x16x128xf32>
      tpu.vector_store %arg13[%c1_51, %c0_52, %c0_53], %109 {strides = array<i32>} : memref<2x16x128xf32, #tpu.memory_space<vmem>>, vector<1x16x128xf32>,
      %c1_54 = arith.constant 1 : index
      %c0_55 = arith.constant 0 : index
      %c0_56 = arith.constant 0 : index
      %110 = vector.load %arg14[%c1_54, %c0_55, %c0_56] : memref<2x16x128xf32, #tpu.memory_space<vmem>>, vector<1x16x128xf32>
      %111 = vector.shape_cast %110 : vector<1x16x128xf32> to vector<16x128xf32>
      %112 = vector.shape_cast %104 : vector<16x128xf32> to vector<1x16x128xf32>
      tpu.vector_store %arg14[%c1_54, %c0_55, %c0_56], %112 {strides = array<i32>} : memref<2x16x128xf32, #tpu.memory_space<vmem>>, vector<1x16x128xf32>,
      %113 = arith.truncf %106 : vector<16x128xf32> to vector<16x128xbf16>
      %c0_57 = arith.constant 0 : index
      %c0_58 = arith.constant 0 : index
      %114 = vector.load %arg15[%c0_57, %c0_58] : memref<16x128xbf16, #tpu.memory_space<vmem>>, vector<16x128xbf16>
      tpu.vector_store %arg15[%c0_57, %c0_58], %113 {strides = array<i32>} : memref<16x128xbf16, #tpu.memory_space<vmem>>, vector<16x128xbf16>,
    } else {
    }
    %c0 = arith.constant 0 : index
    %c0_4 = arith.constant 0 : index
    %8 = vector.load %arg15[%c0, %c0_4] : memref<16x128xbf16, #tpu.memory_space<vmem>>, vector<16x128xbf16>
    %c0_5 = arith.constant 0 : index
    %c0_6 = arith.constant 0 : index
    %9 = vector.load %arg10[%c0_5, %c0_6] : memref<128x128xbf16, #tpu.memory_space<vmem>>, vector<128x128xbf16>
    %cst = arith.constant dense<0.000000e+00> : vector<16x128xf32>
    %10 = tpu.matmul %8, %9, %cst {dimension_numbers = #tpu.dot_dimension_numbers<[1], [0], [0], [1], [0, 0, 1, 1], [], []>} : vector<16x128xbf16>, vector<128x128xbf16>, vector<16x128xf32> -> vector<16x128xf32>
    %c0_7 = arith.constant 0 : index
    %c0_8 = arith.constant 0 : index
    %11 = vector.load %arg11[%c0_7, %c0_8] : memref<1x128xf32, #tpu.memory_space<vmem>>, vector<1x128xf32>
    %12 = vector.broadcast %11 : vector<1x128xf32> to vector<16x128xf32>
    %13 = arith.addf %10, %12 : vector<16x128xf32>
    %c0_9 = arith.constant 0 : index
    %c0_10 = arith.constant 0 : index
    %c0_11 = arith.constant 0 : index
    %14 = vector.load %arg12[%c0_9, %c0_10, %c0_11] : memref<1x16x128xf32, #tpu.memory_space<vmem>>, vector<1x16x128xf32>
    %15 = vector.shape_cast %14 : vector<1x16x128xf32> to vector<16x128xf32>
    %16 = vector.shape_cast %13 : vector<16x128xf32> to vector<1x16x128xf32>
    tpu.vector_store %arg12[%c0_9, %c0_10, %c0_11], %16 {strides = array<i32>} : memref<1x16x128xf32, #tpu.memory_space<vmem>>, vector<1x16x128xf32>,
    return
  }
  func.func @transform_0(%arg0: i32, %arg1: i32) -> (i32, i32, i32) {
    %c0_i32 = arith.constant 0 : i32
    %c0_i32_0 = arith.constant 0 : i32
    %c0_i32_1 = arith.constant 0 : i32
    return %arg0, %c0_i32, %c0_i32_0 : i32, i32, i32
  }
  func.func @transform_1(%arg0: i32, %arg1: i32) -> (i32, i32) {
    %c0_i32 = arith.constant 0 : i32
    %c0_i32_0 = arith.constant 0 : i32
    %c0_i32_1 = arith.constant 0 : i32
    return %c0_i32, %c0_i32_0 : i32, i32
  }
  func.func @transform_2(%arg0: i32, %arg1: i32) -> (i32, i32, i32) {
    %c0_i32 = arith.constant 0 : i32
    %c0_i32_0 = arith.constant 0 : i32
    %c0_i32_1 = arith.constant 0 : i32
    %c0_i32_2 = arith.constant 0 : i32
    return %c0_i32, %c0_i32_0, %c0_i32_1 : i32, i32, i32
  }
  func.func @transform_3(%arg0: i32, %arg1: i32) -> (i32, i32, i32) {
    %c0_i32 = arith.constant 0 : i32
    %c0_i32_0 = arith.constant 0 : i32
    %c0_i32_1 = arith.constant 0 : i32
    %c0_i32_2 = arith.constant 0 : i32
    return %c0_i32, %c0_i32_0, %c0_i32_1 : i32, i32, i32
  }
  func.func @transform_4(%arg0: i32, %arg1: i32) -> (i32, i32) {
    %c0_i32 = arith.constant 0 : i32
    %c0_i32_0 = arith.constant 0 : i32
    %c0_i32_1 = arith.constant 0 : i32
    return %c0_i32, %c0_i32_0 : i32, i32
  }
  func.func @transform_5(%arg0: i32, %arg1: i32) -> (i32, i32) {
    %c0_i32 = arith.constant 0 : i32
    %c0_i32_0 = arith.constant 0 : i32
    %c0_i32_1 = arith.constant 0 : i32
    return %c0_i32, %c0_i32_0 : i32, i32
  }
  func.func @transform_6(%arg0: i32, %arg1: i32) -> (i32, i32) {
    %c0_i32 = arith.constant 0 : i32
    %c0_i32_0 = arith.constant 0 : i32
    %c0_i32_1 = arith.constant 0 : i32
    return %c0_i32, %c0_i32_0 : i32, i32
  }
  func.func @transform_7(%arg0: i32, %arg1: i32) -> (i32, i32) {
    %c0_i32 = arith.constant 0 : i32
    %c0_i32_0 = arith.constant 0 : i32
    %c0_i32_1 = arith.constant 0 : i32
    return %c0_i32, %c0_i32_0 : i32, i32
  }
  func.func @transform_8(%arg0: i32, %arg1: i32) -> (i32, i32) {
    %c0_i32 = arith.constant 0 : i32
    %c0_i32_0 = arith.constant 0 : i32
    return %c0_i32, %arg1 : i32, i32
  }
  func.func @transform_9(%arg0: i32, %arg1: i32) -> (i32, i32) {
    %c0_i32 = arith.constant 0 : i32
    %c0_i32_0 = arith.constant 0 : i32
    return %c0_i32, %arg1 : i32, i32
  }
  func.func @transform_10(%arg0: i32, %arg1: i32) -> (i32, i32, i32) {
    %c0_i32 = arith.constant 0 : i32
    %c0_i32_0 = arith.constant 0 : i32
    return %arg0, %c0_i32, %arg1 : i32, i32, i32
  }
  func.func @transform_11(%arg0: i32, %arg1: i32) -> (i32, i32, i32) {
    %c0_i32 = arith.constant 0 : i32
    %c0_i32_0 = arith.constant 0 : i32
    %c0_i32_1 = arith.constant 0 : i32
    %c0_i32_2 = arith.constant 0 : i32
    return %c0_i32, %c0_i32_0, %c0_i32_1 : i32, i32, i32
  }
  func.func @transform_12(%arg0: i32, %arg1: i32) -> (i32, i32, i32) {
    %c0_i32 = arith.constant 0 : i32
    %c0_i32_0 = arith.constant 0 : i32
    %c0_i32_1 = arith.constant 0 : i32
    %c0_i32_2 = arith.constant 0 : i32
    return %c0_i32, %c0_i32_0, %c0_i32_1 : i32, i32, i32
  }
}

</mosaic_0001>

<llo_original>
// kernel: decoder_forward_multistep.1
$region0: #{decoder_forward_multistep.1}
  #allocation0 [shape = 'u32[]', space=smem, size = 0x4, offset = 0x4, fixed_abs, tag = 'smem constant byte address 0x4 - core index']
  #allocation1 [shape = 'u32[144,128]{1,0:T(1,128)}', space=vmem, size = 0x12000, scoped, tag = 'internal scratch']
  #allocation2 [shape = 'bf16[16,128]{1,0:T(16,128)(2,1)}', space=vmem, size = 0x1000, scoped, tag = 'scratch operand']
  %s0 = inlined_call_operand.vmem [shape: s32[4,16,1], index: 0, kind: input, shape index: {}]
  %s1 = inlined_call_operand.vmem [shape: bf16[256,128], index: 1, kind: input, shape index: {}]
  %s2 = inlined_call_operand.hbm [shape: f32[2,16,128], index: 2, kind: input, shape index: {}, may-alias: {2,11}]
  %s3 = inlined_call_operand.hbm [shape: f32[2,16,128], index: 3, kind: input, shape index: {}, may-alias: {3,12}]
  %s4 = inlined_call_operand.hbm [shape: bf16[256,512], index: 4, kind: input, shape index: {}]
  %s5 = inlined_call_operand.hbm [shape: bf16[256,512], index: 5, kind: input, shape index: {}]
  %s6 = inlined_call_operand.vmem [shape: f32[1,512], index: 6, kind: input, shape index: {}]
  %s7 = inlined_call_operand.vmem [shape: f32[1,512], index: 7, kind: input, shape index: {}]
  %s8 = inlined_call_operand.hbm [shape: bf16[128,256], index: 8, kind: input, shape index: {}]
  %s9 = inlined_call_operand.vmem [shape: f32[1,256], index: 9, kind: input, shape index: {}]
  %s10 = inlined_call_operand.hbm [shape: f32[4,16,256], index: 10, kind: output, shape index: {0}]
  %s11 = inlined_call_operand.hbm [shape: f32[2,16,128], index: 11, kind: output, shape index: {1}, may-alias: {2,11}]
  %s12 = inlined_call_operand.hbm [shape: f32[2,16,128], index: 12, kind: output, shape index: {2}, may-alias: {3,12}]
  %13 = xla_tuple %s10, %s11, %s12
  %s14 = sld [smem:[#allocation0]]
  $region117: #{decoder_forward_multistep.1} parent=0
    _
  %s16 = ssub.s32 1, %s14
  %s17 = scalar_select 0, %s16, %s14
  $region1: #{decoder_forward_multistep.1} parent=0
    #allocation3 [shape = 'u8[16384]{0}', space=vmem, size = 0x4000, scoped, tag = 'input window, operand 2, single buffered']
    #allocation4 [shape = 's32[2]{0}', space=sflag, size = 0x8, scoped, tag = 'scoped memory for decoder_forward_multistep.1']
    #allocation5 [shape = 's32[2]{0}', space=sflag, size = 0x8, scoped, tag = 'scoped memory for decoder_forward_multistep.1']
    #allocation6 [shape = 'u8[16384]{0}', space=vmem, size = 0x4000, scoped, tag = 'input window, operand 3, single buffered']
    #allocation7 [shape = 's32[1]{0}', space=sflag, size = 0x4, scoped, tag = 'scoped memory for decoder_forward_multistep.1']
    #allocation8 [shape = 'u8[262144]{0}', space=vmem, size = 0x40000, scoped, tag = 'input window, operand 4, single buffered']
    #allocation9 [shape = 'u8[262144]{0}', space=vmem, size = 0x40000, scoped, tag = 'input window, operand 5, single buffered']
    #allocation10 [shape = 's32[1]{0}', space=sflag, size = 0x4, scoped, tag = 'scoped memory for decoder_forward_multistep.1']
    #allocation11 [shape = 'u8[65536]{0}', space=vmem, size = 0x10000, scoped, tag = 'input window, operand 8']
    #allocation12 [shape = 'u8[16384]{0}', space=vmem, size = 0x4000, scoped, tag = 'output window, operand 0']
    #allocation13 [shape = 'u8[16384]{0}', space=vmem, size = 0x4000, scoped, tag = 'output window, operand 1, single buffered']
    #allocation14 [shape = 's32[1]{0}', space=sflag, size = 0x4, scoped, tag = 'scoped memory for decoder_forward_multistep.1']
    #allocation15 [shape = 'u8[16384]{0}', space=vmem, size = 0x4000, scoped, tag = 'output window, operand 2, single buffered']
    %18 = vsyncpa [#allocation4], 0
    %19 = vsyncpa [#allocation7], 0
    %20 = vsyncpa [#allocation10], 0
    %21 = vsyncpa [#allocation5], 0
    %s22 = scalar_lea.sflag [#allocation5], 1
    %23 = vsyncpa %s22, 0
    %24 = vsyncpa [#allocation14], 0
    loop: start=0, step=1, limit=10
    $region2: #{decoder_forward_multistep.1} parent=1 // loop_pre_header
      _
    $region3: #{decoder_forward_multistep.1} parent=1 // loop_header
      %s26 = sphi 0, %s30
      %p27 = scmp.ge.s32.totalorder %s26, 10
      %s33 = sphi 0, %s45
      %s34 = sphi 0, %s41
      %s35 = sphi 0, %s33
      %s36 = sphi 0, %s34
      %s37 = sphi 0, %s35
      %s38 = sphi 0, %s36
      %s48 = sphi 0, %s50
      %s51 = sphi 0, %s48
      %s52 = sphi 0, %s51
      %s68 = sphi 0, %s52
      %s72 = sphi 0, %s72
      %s74 = sphi 0, %s72
      %s75 = sphi 0, %s74
      %s89 = sphi 0, %s75
      %s93 = sphi 0, %s93
      %s95 = sphi 0, %s93
      %s96 = sphi 0, %s95
      %s110 = sphi 0, %s96
      %s114 = sphi 0, %s114
      %s116 = sphi 0, %s114
      %s117 = sphi 0, %s116
      %s131 = sphi 0, %s117
      %s135 = sphi 0, %s135
      %s137 = sphi 0, %s135
      %s138 = sphi 0, %s137
      %s152 = sphi 0, %s138
      %s156 = sphi 0, %s156
      %s158 = sphi 0, %s156
      %s159 = sphi 0, %s158
      %s173 = sphi 0, %s159
      %s177 = sphi 0, %s177
      %s179 = sphi 0, %s177
      %s180 = sphi 0, %s179
      %s194 = sphi 0, %s180
      %s198 = sphi 0, %s198
      %s200 = sphi 0, %s198
      %s201 = sphi 0, %s200
      %s215 = sphi 0, %s201
      %s221 = sphi 0, %s223
      %s224 = sphi 0, %s221
      %s225 = sphi 0, %s224
      %s241 = sphi 0, %s225
      %s247 = sphi 0, %s249
      %s250 = sphi 0, %s247
      %s251 = sphi 0, %s250
      %s267 = sphi 0, %s251
      %s275 = sphi 0, %s277
      %s278 = sphi 0, %s275
      %s279 = sphi 0, %s278
      %s295 = sphi 0, %s279
      %s299 = sphi 0, %s299
      %s301 = sphi 0, %s299
      %s302 = sphi 0, %s301
      %s316 = sphi 0, %s302
      %s320 = sphi 0, %s320
      %s322 = sphi 0, %s320
      %s323 = sphi 0, %s322
      %s337 = sphi 0, %s323
    $region4: #{decoder_forward_multistep.1} parent=1 // loop_header_branch
      %29 = sbr.rel (%p27) target = $region8
    $region5: #{decoder_forward_multistep.1} parent=1 // loop_body
      %s31 = ssub.s32 %s26, 1
      %s32 = ssub.s32 %s26, 2
      %s39 = sadd.s32 1, %s34
      %p40 = scmp.ge.s32.totalorder %s39, 2
      %s41 = scalar_select %p40, 0, %s39
      %s42 = sadd.s32 1, %s33
      %s43 = scalar_select %p40, %s42, %s33
      %p44 = scmp.ge.s32.totalorder %s43, 4
      %s45 = scalar_select %p44, 0, %s43
      %s46 = ssub.s32 %s33, %s45
      %p47 = scmp.eq.s32.totalorder %s46, 0
      %s49 = sadd.s32 %s48, 1
      %s50 = scalar_select %p47, %s48, %s49
      %p53 = pneg %p47
      %p54 = scmp.eq.s32.totalorder %s26, 7
      %p55 = por %p53, %p54
      %p56 = scmp.ne.s32.totalorder %s48, %s51
      %p57 = scmp.eq.s32.totalorder %s26, 0
      %p58 = por %p56, %p57
      %p59 = scmp.ne.s32.totalorder %s48, %s51
      %p60 = scmp.eq.s32.totalorder %s31, 7
      %p61 = por %p59, %p60
      %p62 = scmp.ne.s32.totalorder %s51, %s52
      %p63 = scmp.eq.s32.totalorder %s31, 0
      %p64 = por %p62, %p63
      %p65 = scmp.ne.s32.totalorder %s51, %s52
      %p66 = scmp.eq.s32.totalorder %s32, 7
      %p67 = por %p65, %p66
      %p69 = scmp.ne.s32.totalorder %s52, %s68
      %p70 = scmp.eq.s32.totalorder %s32, 0
      %p71 = por %p69, %p70
      %s73 = sadd.s32 %s72, 1
      %p76 = scmp.eq.s32.totalorder %s26, 7
      %p77 = scmp.ne.s32.totalorder %s72, %s74
      %p78 = scmp.eq.s32.totalorder %s26, 0
      %p79 = por %p77, %p78
      %p80 = scmp.ne.s32.totalorder %s72, %s74
      %p81 = scmp.eq.s32.totalorder %s31, 7
      %p82 = por %p80, %p81
      %p83 = scmp.ne.s32.totalorder %s74, %s75
      %p84 = scmp.eq.s32.totalorder %s31, 0
      %p85 = por %p83, %p84
      %p86 = scmp.ne.s32.totalorder %s74, %s75
      %p87 = scmp.eq.s32.totalorder %s32, 7
      %p88 = por %p86, %p87
      %p90 = scmp.ne.s32.totalorder %s75, %s89
      %p91 = scmp.eq.s32.totalorder %s32, 0
      %p92 = por %p90, %p91
      %s94 = sadd.s32 %s93, 1
      %p97 = scmp.eq.s32.totalorder %s26, 7
      %p98 = scmp.ne.s32.totalorder %s93, %s95
      %p99 = scmp.eq.s32.totalorder %s26, 0
      %p100 = por %p98, %p99
      %p101 = scmp.ne.s32.totalorder %s93, %s95
      %p102 = scmp.eq.s32.totalorder %s31, 7
      %p103 = por %p101, %p102
      %p104 = scmp.ne.s32.totalorder %s95, %s96
      %p105 = scmp.eq.s32.totalorder %s31, 0
      %p106 = por %p104, %p105
      %p107 = scmp.ne.s32.totalorder %s95, %s96
      %p108 = scmp.eq.s32.totalorder %s32, 7
      %p109 = por %p107, %p108
      %p111 = scmp.ne.s32.totalorder %s96, %s110
      %p112 = scmp.eq.s32.totalorder %s32, 0
      %p113 = por %p111, %p112
      %s115 = sadd.s32 %s114, 1
      %p118 = scmp.eq.s32.totalorder %s26, 7
      %p119 = scmp.ne.s32.totalorder %s114, %s116
      %p120 = scmp.eq.s32.totalorder %s26, 0
      %p121 = por %p119, %p120
      %p122 = scmp.ne.s32.totalorder %s114, %s116
      %p123 = scmp.eq.s32.totalorder %s31, 7
      %p124 = por %p122, %p123
      %p125 = scmp.ne.s32.totalorder %s116, %s117
      %p126 = scmp.eq.s32.totalorder %s31, 0
      %p127 = por %p125, %p126
      %p128 = scmp.ne.s32.totalorder %s116, %s117
      %p129 = scmp.eq.s32.totalorder %s32, 7
      %p130 = por %p128, %p129
      %p132 = scmp.ne.s32.totalorder %s117, %s131
      %p133 = scmp.eq.s32.totalorder %s32, 0
      %p134 = por %p132, %p133
      %s136 = sadd.s32 %s135, 1
      %p139 = scmp.eq.s32.totalorder %s26, 7
      %p140 = scmp.ne.s32.totalorder %s135, %s137
      %p141 = scmp.eq.s32.totalorder %s26, 0
      %p142 = por %p140, %p141
      %p143 = scmp.ne.s32.totalorder %s135, %s137
      %p144 = scmp.eq.s32.totalorder %s31, 7
      %p145 = por %p143, %p144
      %p146 = scmp.ne.s32.totalorder %s137, %s138
      %p147 = scmp.eq.s32.totalorder %s31, 0
      %p148 = por %p146, %p147
      %p149 = scmp.ne.s32.totalorder %s137, %s138
      %p150 = scmp.eq.s32.totalorder %s32, 7
      %p151 = por %p149, %p150
      %p153 = scmp.ne.s32.totalorder %s138, %s152
      %p154 = scmp.eq.s32.totalorder %s32, 0
      %p155 = por %p153, %p154
      %s157 = sadd.s32 %s156, 1
      %p160 = scmp.eq.s32.totalorder %s26, 7
      %p161 = scmp.ne.s32.totalorder %s156, %s158
      %p162 = scmp.eq.s32.totalorder %s26, 0
      %p163 = por %p161, %p162
      %p164 = scmp.ne.s32.totalorder %s156, %s158
      %p165 = scmp.eq.s32.totalorder %s31, 7
      %p166 = por %p164, %p165
      %p167 = scmp.ne.s32.totalorder %s158, %s159
      %p168 = scmp.eq.s32.totalorder %s31, 0
      %p169 = por %p167, %p168
      %p170 = scmp.ne.s32.totalorder %s158, %s159
      %p171 = scmp.eq.s32.totalorder %s32, 7
      %p172 = por %p170, %p171
      %p174 = scmp.ne.s32.totalorder %s159, %s173
      %p175 = scmp.eq.s32.totalorder %s32, 0
      %p176 = por %p174, %p175
      %s178 = sadd.s32 %s177, 1
      %p181 = scmp.eq.s32.totalorder %s26, 7
      %p182 = scmp.ne.s32.totalorder %s177, %s179
      %p183 = scmp.eq.s32.totalorder %s26, 0
      %p184 = por %p182, %p183
      %p185 = scmp.ne.s32.totalorder %s177, %s179
      %p186 = scmp.eq.s32.totalorder %s31, 7
      %p187 = por %p185, %p186
      %p188 = scmp.ne.s32.totalorder %s179, %s180
      %p189 = scmp.eq.s32.totalorder %s31, 0
      %p190 = por %p188, %p189
      %p191 = scmp.ne.s32.totalorder %s179, %s180
      %p192 = scmp.eq.s32.totalorder %s32, 7
      %p193 = por %p191, %p192
      %p195 = scmp.ne.s32.totalorder %s180, %s194
      %p196 = scmp.eq.s32.totalorder %s32, 0
      %p197 = por %p195, %p196
      %s199 = sadd.s32 %s198, 1
      %p202 = scmp.eq.s32.totalorder %s26, 7
      %p203 = scmp.ne.s32.totalorder %s198, %s200
      %p204 = scmp.eq.s32.totalorder %s26, 0
      %p205 = por %p203, %p204
      %p206 = scmp.ne.s32.totalorder %s198, %s200
      %p207 = scmp.eq.s32.totalorder %s31, 7
      %p208 = por %p206, %p207
      %p209 = scmp.ne.s32.totalorder %s200, %s201
      %p210 = scmp.eq.s32.totalorder %s31, 0
      %p211 = por %p209, %p210
      %p212 = scmp.ne.s32.totalorder %s200, %s201
      %p213 = scmp.eq.s32.totalorder %s32, 7
      %p214 = por %p212, %p213
      %p216 = scmp.ne.s32.totalorder %s201, %s215
      %p217 = scmp.eq.s32.totalorder %s32, 0
      %p218 = por %p216, %p217
      %s219 = ssub.s32 %s34, %s41
      %p220 = scmp.eq.s32.totalorder %s219, 0
      %s222 = sadd.s32 %s221, 1
      %s223 = scalar_select %p220, %s221, %s222
      %p226 = pneg %p220
      %p227 = scmp.eq.s32.totalorder %s26, 7
      %p228 = por %p226, %p227
      %p229 = scmp.ne.s32.totalorder %s221, %s224
      %p230 = scmp.eq.s32.totalorder %s26, 0
      %p231 = por %p229, %p230
      %p232 = scmp.ne.s32.totalorder %s221, %s224
      %p233 = scmp.eq.s32.totalorder %s31, 7
      %p234 = por %p232, %p233
      %p235 = scmp.ne.s32.totalorder %s224, %s225
      %p236 = scmp.eq.s32.totalorder %s31, 0
      %p237 = por %p235, %p236
      %p238 = scmp.ne.s32.totalorder %s224, %s225
      %p239 = scmp.eq.s32.totalorder %s32, 7
      %p240 = por %p238, %p239
      %p242 = scmp.ne.s32.totalorder %s225, %s241
      %p243 = scmp.eq.s32.totalorder %s32, 0
      %p244 = por %p242, %p243
      %s245 = ssub.s32 %s34, %s41
      %p246 = scmp.eq.s32.totalorder %s245, 0
      %s248 = sadd.s32 %s247, 1
      %s249 = scalar_select %p246, %s247, %s248
      %p252 = pneg %p246
      %p253 = scmp.eq.s32.totalorder %s26, 7
      %p254 = por %p252, %p253
      %p255 = scmp.ne.s32.totalorder %s247, %s250
      %p256 = scmp.eq.s32.totalorder %s26, 0
      %p257 = por %p255, %p256
      %p258 = scmp.ne.s32.totalorder %s247, %s250
      %p259 = scmp.eq.s32.totalorder %s31, 7
      %p260 = por %p258, %p259
      %p261 = scmp.ne.s32.totalorder %s250, %s251
      %p262 = scmp.eq.s32.totalorder %s31, 0
      %p263 = por %p261, %p262
      %p264 = scmp.ne.s32.totalorder %s250, %s251
      %p265 = scmp.eq.s32.totalorder %s32, 7
      %p266 = por %p264, %p265
      %p268 = scmp.ne.s32.totalorder %s251, %s267
      %p269 = scmp.eq.s32.totalorder %s32, 0
      %p270 = por %p268, %p269
      %s271 = ssub.s32 %s33, %s45
      %s272 = ssub.s32 %s34, %s41
      %s273 = sor.u32 %s271, %s272
      %p274 = scmp.eq.s32.totalorder %s273, 0
      %s276 = sadd.s32 %s275, 1
      %s277 = scalar_select %p274, %s275, %s276
      %p280 = pneg %p274
      %p281 = scmp.eq.s32.totalorder %s26, 7
      %p282 = por %p280, %p281
      %p283 = scmp.ne.s32.totalorder %s275, %s278
      %p284 = scmp.eq.s32.totalorder %s26, 0
      %p285 = por %p283, %p284
      %p286 = scmp.ne.s32.totalorder %s275, %s278
      %p287 = scmp.eq.s32.totalorder %s31, 7
      %p288 = por %p286, %p287
      %p289 = scmp.ne.s32.totalorder %s278, %s279
      %p290 = scmp.eq.s32.totalorder %s31, 0
      %p291 = por %p289, %p290
      %p292 = scmp.ne.s32.totalorder %s278, %s279
      %p293 = scmp.eq.s32.totalorder %s32, 7
      %p294 = por %p292, %p293
      %p296 = scmp.ne.s32.totalorder %s279, %s295
      %p297 = scmp.eq.s32.totalorder %s32, 0
      %p298 = por %p296, %p297
      %s300 = sadd.s32 %s299, 1
      %p303 = scmp.eq.s32.totalorder %s26, 7
      %p304 = scmp.ne.s32.totalorder %s299, %s301
      %p305 = scmp.eq.s32.totalorder %s26, 0
      %p306 = por %p304, %p305
      %p307 = scmp.ne.s32.totalorder %s299, %s301
      %p308 = scmp.eq.s32.totalorder %s31, 7
      %p309 = por %p307, %p308
      %p310 = scmp.ne.s32.totalorder %s301, %s302
      %p311 = scmp.eq.s32.totalorder %s31, 0
      %p312 = por %p310, %p311
      %p313 = scmp.ne.s32.totalorder %s301, %s302
      %p314 = scmp.eq.s32.totalorder %s32, 7
      %p315 = por %p313, %p314
      %p317 = scmp.ne.s32.totalorder %s302, %s316
      %p318 = scmp.eq.s32.totalorder %s32, 0
      %p319 = por %p317, %p318
      %s321 = sadd.s32 %s320, 1
      %p324 = scmp.eq.s32.totalorder %s26, 7
      %p325 = scmp.ne.s32.totalorder %s320, %s322
      %p326 = scmp.eq.s32.totalorder %s26, 0
      %p327 = por %p325, %p326
      %p328 = scmp.ne.s32.totalorder %s320, %s322
      %p329 = scmp.eq.s32.totalorder %s31, 7
      %p330 = por %p328, %p329
      %p331 = scmp.ne.s32.totalorder %s322, %s323
      %p332 = scmp.eq.s32.totalorder %s31, 0
      %p333 = por %p331, %p332
      %p334 = scmp.ne.s32.totalorder %s322, %s323
      %p335 = scmp.eq.s32.totalorder %s32, 7
      %p336 = por %p334, %p335
      %p338 = scmp.ne.s32.totalorder %s323, %s337
      %p339 = scmp.eq.s32.totalorder %s32, 0
      %p340 = por %p338, %p339
      %p341 = scmp.le.s32.totalorder 1, %s26
      %p342 = scmp.lt.s32.totalorder %s26, 9
      %p343 = pnand %p341, %p342
      %p344 = pneg %p343
      // Predicated region
      $region9: #{decoder_forward_multistep.1} parent=5 // pred_check
        _
      $region10: #{decoder_forward_multistep.1} parent=5 // pred_check_branch
        %346 = sbr.rel (%p343) target = $region12
      $region11: #{decoder_forward_multistep.1} parent=5 // pred_region
        %s347 = ssub.s32 %s26, 1
        // Predicated region
        $region13: #{decoder_forward_multistep.1} parent=11 // pred_check
          %p348 = pneg %p85
        $region14: #{decoder_forward_multistep.1} parent=11 // pred_check_branch
          %350 = sbr.rel (%p348) target = $region16
        $region15: #{decoder_forward_multistep.1} parent=11 // pred_region
          _
        $region16: #{decoder_forward_multistep.1} parent=11 // pred_fallthru
          _
        // Predicated region
        $region17: #{decoder_forward_multistep.1} parent=11 // pred_check
          %p351 = pneg %p106
        $region18: #{decoder_forward_multistep.1} parent=11 // pred_check_branch
          %353 = sbr.rel (%p351) target = $region20
        $region19: #{decoder_forward_multistep.1} parent=11 // pred_region
          %s355 = ssub.s32 512, 512
          %356 = vsyncadd [#allocation4], %s355
          %s357 = sshll.u32 [#allocation3], 4
          %s358 = int_to_ptr.vmem [resolvable:$true] %s357
          %363 = dma.hbm_to_vmem [thread:$0]  %s2, 512, %s358, [#allocation4], 128, 128, 8
        $region20: #{decoder_forward_multistep.1} parent=11 // pred_fallthru
          _
        // Predicated region
        $region21: #{decoder_forward_multistep.1} parent=11 // pred_check
          %p364 = pneg %p127
        $region22: #{decoder_forward_multistep.1} parent=11 // pred_check_branch
          %366 = sbr.rel (%p364) target = $region24
        $region23: #{decoder_forward_multistep.1} parent=11 // pred_region
          %s368 = ssub.s32 512, 512
          %369 = vsyncadd [#allocation7], %s368
          %s370 = sshll.u32 [#allocation6], 4
          %s371 = int_to_ptr.vmem [resolvable:$true] %s370
          %376 = dma.hbm_to_vmem [thread:$0]  %s3, 512, %s371, [#allocation7], 128, 128, 8
        $region24: #{decoder_forward_multistep.1} parent=11 // pred_fallthru
          _
        // Predicated region
        $region25: #{decoder_forward_multistep.1} parent=11 // pred_check
          %p377 = pneg %p148
        $region26: #{decoder_forward_multistep.1} parent=11 // pred_check_branch
          %379 = sbr.rel (%p377) target = $region28
        $region27: #{decoder_forward_multistep.1} parent=11 // pred_region
          %s381 = ssub.s32 8192, 8192
          %382 = vsyncadd [#allocation7], %s381
          %s383 = sshll.u32 [#allocation8], 4
          %s384 = int_to_ptr.vmem [resolvable:$true] %s383
          %389 = dma.hbm_to_vmem [thread:$0]  %s4, 8192, %s384, [#allocation7], 256, 256, 16
        $region28: #{decoder_forward_multistep.1} parent=11 // pred_fallthru
          _
        // Predicated region
        $region29: #{decoder_forward_multistep.1} parent=11 // pred_check
          %p390 = pneg %p169
        $region30: #{decoder_forward_multistep.1} parent=11 // pred_check_branch
          %392 = sbr.rel (%p390) target = $region32
        $region31: #{decoder_forward_multistep.1} parent=11 // pred_region
          %s394 = ssub.s32 8192, 8192
          %395 = vsyncadd [#allocation10], %s394
          %s396 = sshll.u32 [#allocation9], 4
          %s397 = int_to_ptr.vmem [resolvable:$true] %s396
          %402 = dma.hbm_to_vmem [thread:$0]  %s5, 8192, %s397, [#allocation10], 256, 256, 16
        $region32: #{decoder_forward_multistep.1} parent=11 // pred_fallthru
          _
        // Predicated region
        $region33: #{decoder_forward_multistep.1} parent=11 // pred_check
          %p403 = pneg %p190
        $region34: #{decoder_forward_multistep.1} parent=11 // pred_check_branch
          %405 = sbr.rel (%p403) target = $region36
        $region35: #{decoder_forward_multistep.1} parent=11 // pred_region
          _
        $region36: #{decoder_forward_multistep.1} parent=11 // pred_fallthru
          _
        // Predicated region
        $region37: #{decoder_forward_multistep.1} parent=11 // pred_check
          %p406 = pneg %p211
        $region38: #{decoder_forward_multistep.1} parent=11 // pred_check_branch
          %408 = sbr.rel (%p406) target = $region40
        $region39: #{decoder_forward_multistep.1} parent=11 // pred_region
          _
        $region40: #{decoder_forward_multistep.1} parent=11 // pred_fallthru
          _
      $region12: #{decoder_forward_multistep.1} parent=5 // pred_fallthru
        _
      %p409 = scmp.lt.s32.totalorder %s26, 8
      // Predicated region
      $region41: #{decoder_forward_multistep.1} parent=5 // pred_check
        %p410 = pneg %p409
      $region42: #{decoder_forward_multistep.1} parent=5 // pred_check_branch
        %412 = sbr.rel (%p410) target = $region44
      $region43: #{decoder_forward_multistep.1} parent=5 // pred_region
        // Predicated region
        $region45: #{decoder_forward_multistep.1} parent=43 // pred_check
          %p413 = pneg %p58
        $region46: #{decoder_forward_multistep.1} parent=43 // pred_check_branch
          %415 = sbr.rel (%p413) target = $region48
        $region47: #{decoder_forward_multistep.1} parent=43 // pred_region
          %p416 = scmp.lt.s32.totalorder %s33, 3
          %s417 = scalar_select %p416, %s33, 3
          %s418 = smul.addr %s417, 2
          %s419 = smul.addr %s418, 8
          %s420 = scalar_lea.vmem %s0, %s419
        $region48: #{decoder_forward_multistep.1} parent=43 // pred_fallthru
          _
        // Predicated region
        $region49: #{decoder_forward_multistep.1} parent=43 // pred_check
          %p421 = pneg %p231
        $region50: #{decoder_forward_multistep.1} parent=43 // pred_check_branch
          %423 = sbr.rel (%p421) target = $region52
        $region51: #{decoder_forward_multistep.1} parent=43 // pred_region
          %s424 = sand.u32 %s26, 1
          %s425 = scalar_lea.sflag [#allocation4], %s424
          %s426 = sand.u32 %s221, 1
          %s427 = smul.addr %s426, 64
          %s428 = scalar_lea.vmem [#allocation11], %s427
          %s430 = ssub.s32 1024, 1024
          %431 = vsyncadd %s425, %s430
          %s432 = smul.addr %s34, 64
          %s433 = scalar_lea.hbm %s8, %s432
          %s434 = sshll.u32 %s428, 4
          %s435 = int_to_ptr.vmem [resolvable:$true] %s434
          %440 = dma.hbm_to_vmem [thread:$0]  %s433, 1024, %s435, %s425, 128, 64, 4
        $region52: #{decoder_forward_multistep.1} parent=43 // pred_fallthru
          _
        // Predicated region
        $region53: #{decoder_forward_multistep.1} parent=43 // pred_check
          %p441 = pneg %p257
        $region54: #{decoder_forward_multistep.1} parent=43 // pred_check_branch
          %443 = sbr.rel (%p441) target = $region56
        $region55: #{decoder_forward_multistep.1} parent=43 // pred_region
          %p444 = scmp.lt.s32.totalorder %s34, 1
          %s445 = scalar_select %p444, %s34, 1
          %s446 = scalar_lea.vmem %s9, %s445
        $region56: #{decoder_forward_multistep.1} parent=43 // pred_fallthru
          _
      $region44: #{decoder_forward_multistep.1} parent=5 // pred_fallthru
        _
      %p447 = scmp.le.s32.totalorder 1, %s26
      %p448 = scmp.lt.s32.totalorder %s26, 9
      %p449 = pnand %p447, %p448
      %p450 = pneg %p449
      // Predicated region
      $region57: #{decoder_forward_multistep.1} parent=5 // pred_check
        _
      $region58: #{decoder_forward_multistep.1} parent=5 // pred_check_branch
        %452 = sbr.rel (%p449) target = $region60
      $region59: #{decoder_forward_multistep.1} parent=5 // pred_region
        %s453 = ssub.s32 %s26, 1
        // Predicated region
        $region61: #{decoder_forward_multistep.1} parent=59 // pred_check
          %p454 = pneg %p106
        $region62: #{decoder_forward_multistep.1} parent=59 // pred_check_branch
          %456 = sbr.rel (%p454) target = $region64
        $region63: #{decoder_forward_multistep.1} parent=59 // pred_region
          %457 = dma.done [#allocation4], 512
        $region64: #{decoder_forward_multistep.1} parent=59 // pred_fallthru
          _
        // Predicated region
        $region65: #{decoder_forward_multistep.1} parent=59 // pred_check
          %p458 = pneg %p127
        $region66: #{decoder_forward_multistep.1} parent=59 // pred_check_branch
          %460 = sbr.rel (%p458) target = $region68
        $region67: #{decoder_forward_multistep.1} parent=59 // pred_region
          %461 = dma.done [#allocation7], 512
        $region68: #{decoder_forward_multistep.1} parent=59 // pred_fallthru
          _
        // Predicated region
        $region69: #{decoder_forward_multistep.1} parent=59 // pred_check
          %p462 = pneg %p148
        $region70: #{decoder_forward_multistep.1} parent=59 // pred_check_branch
          %464 = sbr.rel (%p462) target = $region72
        $region71: #{decoder_forward_multistep.1} parent=59 // pred_region
          %465 = dma.done [#allocation7], 8192
        $region72: #{decoder_forward_multistep.1} parent=59 // pred_fallthru
          _
        // Predicated region
        $region73: #{decoder_forward_multistep.1} parent=59 // pred_check
          %p466 = pneg %p169
        $region74: #{decoder_forward_multistep.1} parent=59 // pred_check_branch
          %468 = sbr.rel (%p466) target = $region76
        $region75: #{decoder_forward_multistep.1} parent=59 // pred_region
          %469 = dma.done [#allocation10], 8192
        $region76: #{decoder_forward_multistep.1} parent=59 // pred_fallthru
          _
        %s470 = sand.u32 %s31, 1
        %s471 = scalar_lea.sflag [#allocation4], %s470
        %s472 = sand.u32 %s224, 1
        %s473 = smul.addr %s472, 64
        %s474 = scalar_lea.vmem [#allocation11], %s473
        // Predicated region
        $region77: #{decoder_forward_multistep.1} parent=59 // pred_check
          %p475 = pneg %p237
        $region78: #{decoder_forward_multistep.1} parent=59 // pred_check_branch
          %477 = sbr.rel (%p475) target = $region80
        $region79: #{decoder_forward_multistep.1} parent=59 // pred_region
          %478 = dma.done %s471, 1024
        $region80: #{decoder_forward_multistep.1} parent=59 // pred_fallthru
          _
        %p479 = scmp.lt.s32.totalorder %s35, 3
        %s480 = scalar_select %p479, %s35, 3
        %s481 = smul.addr %s480, 2
        %s482 = smul.addr %s481, 8
        %s483 = scalar_lea.vmem %s0, %s482
        %p484 = pneg %p64
        %p485 = pneg %p61
        %p486 = pneg %p85
        %p487 = pneg %p82
        %p488 = pneg %p106
        %p489 = pneg %p103
        %p490 = pneg %p127
        %p491 = pneg %p124
        %p492 = pneg %p148
        %p493 = pneg %p145
        %p494 = pneg %p169
        %p495 = pneg %p166
        %p496 = pneg %p190
        %p497 = pneg %p187
        %p498 = pneg %p211
        %p499 = pneg %p208
        %s500 = sand.u32 %s31, 1
        %s501 = scalar_lea.sflag [#allocation4], %s500
        %s502 = sand.u32 %s224, 1
        %s503 = smul.addr %s502, 64
        %s504 = scalar_lea.vmem [#allocation11], %s503
        %p505 = pneg %p237
        %p506 = pneg %p234
        %p507 = scmp.lt.s32.totalorder %s36, 1
        %s508 = scalar_select %p507, %s36, 1
        %s509 = scalar_lea.vmem %s9, %s508
        %p510 = pneg %p263
        %p511 = pneg %p260
        %p512 = pneg %p291
        %p513 = pneg %p288
        %s514 = sand.u32 %s278, 1
        %s515 = scalar_lea.sflag [#allocation5], %s514
        %s516 = sand.u32 %s278, 1
        %s517 = smul.addr %s516, 16
        %s518 = scalar_lea.vmem [#allocation12], %s517
        %p519 = pneg %p312
        %p520 = pneg %p309
        %p521 = pneg %p333
        %p522 = pneg %p330
        %p523 = scmp.lt.s32.totalorder %s35, 3
        %s524 = scalar_select %p523, %s35, 3
        %s525 = smul.addr %s524, 2
        %s526 = smul.addr %s525, 8
        %s527 = scalar_lea.vmem %s0, %s526
        %p528 = scmp.lt.s32.totalorder %s36, 1
        %s529 = scalar_select %p528, %s36, 1
        %s530 = scalar_lea.vmem %s9, %s529
        %p532 = scmp.eq.s32.totalorder %s35, 0
        %p533 = scmp.eq.s32.totalorder %s36, 0
        %p534 = pnand %p532, %p533
        %p535 = pneg %p534
        // Predicated region
        $region81: #{decoder_forward_multistep.1} parent=59 // pred_check
          _
        $region82: #{decoder_forward_multistep.1} parent=59 // pred_check_branch
          %537 = sbr.rel (%p534) target = $region84
        $region83: #{decoder_forward_multistep.1} parent=59 // pred_region
          %v538 = vld [vmem:[#allocation3] sm:$0xff]
          %v539 = vld [vmem:[#allocation3 + $0x8] sm:$0xff]
          %v540 = vld [vmem:[#allocation3 + $0x10] sm:$0xff]
          %v541 = vld [vmem:[#allocation3 + $0x18] sm:$0xff]
          %542 = vst [vmem:[#allocation13] sm:$0xff] %v538
          %543 = vst [vmem:[#allocation13 + $0x8] sm:$0xff] %v539
          %544 = vst [vmem:[#allocation13 + $0x10] sm:$0xff] %v540
          %545 = vst [vmem:[#allocation13 + $0x18] sm:$0xff] %v541
          %v546 = vld [vmem:[#allocation6] sm:$0xff]
          %v547 = vld [vmem:[#allocation6 + $0x8] sm:$0xff]
          %v548 = vld [vmem:[#allocation6 + $0x10] sm:$0xff]
          %v549 = vld [vmem:[#allocation6 + $0x18] sm:$0xff]
          %550 = vst [vmem:[#allocation15] sm:$0xff] %v546
          %551 = vst [vmem:[#allocation15 + $0x8] sm:$0xff] %v547
          %552 = vst [vmem:[#allocation15 + $0x10] sm:$0xff] %v548
          %553 = vst [vmem:[#allocation15 + $0x18] sm:$0xff] %v549
        $region84: #{decoder_forward_multistep.1} parent=59 // pred_fallthru
          _
        // Predicated region
        $region85: #{decoder_forward_multistep.1} parent=59 // pred_check
          %p554 = pneg %p533
        $region86: #{decoder_forward_multistep.1} parent=59 // pred_check_branch
          %556 = sbr.rel (%p554) target = $region88
        $region87: #{decoder_forward_multistep.1} parent=59 // pred_region
          %v557 = vld [vmem:[%s527] sm:$0xff]
          %v558 = vld [vmem:[%s527 + $0x8] sm:$0xff]
          %v559 = vlaneseq
          %v560 = vand.u32 %v559, 127
          %v561 = vadd.s32 %v560, 128
          %562 = vset.pattern.permute.xlu0 0
          %563 = vperm.xlu0 %562, %v557
          %v564 = vpop.permute.xlu0 %563
          %565 = vset.pattern.permute.xlu0 0
          %566 = vperm.xlu0 %565, %v558
          %v567 = vpop.permute.xlu0 %566
          %vm568 = vcmp.eq.s32.totalorder %v560, %v564
          %vm569 = vcmp.eq.s32.totalorder %v561, %v564
          %vm570 = vcmp.eq.s32.totalorder %v560, %v567
          %vm571 = vcmp.eq.s32.totalorder %v561, %v567
          %v572 = vsel %vm568, 1, 0
          %v573 = vsel %vm569, 1, 0
          %v574 = vsel %vm570, 1, 0
          %v575 = vsel %vm571, 1, 0
          %v576 = vcvt.s32.f32 %v572
          %v577 = vcvt.s32.f32 %v573
          %v578 = vcvt.s32.f32 %v574
          %v579 = vcvt.s32.f32 %v575
          %v580 = vpack.c.bf16 %v578, %v576
          %v581 = vpack.c.bf16 %v579, %v577
          %v582 = vld [vmem:[%s1] sm:$0xf]
          %v583 = vld [vmem:[%s1 + $0x4] sm:$0xf]
          %v584 = vld [vmem:[%s1 + $0x8] sm:$0xf]
          %v585 = vld [vmem:[%s1 + $0xc] sm:$0xf]
          %v586 = vld [vmem:[%s1 + $0x10] sm:$0xf]
          %v587 = vld [vmem:[%s1 + $0x14] sm:$0xf]
          %v588 = vld [vmem:[%s1 + $0x18] sm:$0xf]
          %v589 = vld [vmem:[%s1 + $0x1c] sm:$0xf]
          %v590 = vld [vmem:[%s1 + $0x20] sm:$0xf]
          %v591 = vld [vmem:[%s1 + $0x24] sm:$0xf]
          %v592 = vld [vmem:[%s1 + $0x28] sm:$0xf]
          %v593 = vld [vmem:[%s1 + $0x2c] sm:$0xf]
          %v594 = vld [vmem:[%s1 + $0x30] sm:$0xf]
          %v595 = vld [vmem:[%s1 + $0x34] sm:$0xf]
          %v596 = vld [vmem:[%s1 + $0x38] sm:$0xf]
          %v597 = vld [vmem:[%s1 + $0x3c] sm:$0xf]
          %v598 = vld [vmem:[%s1 + $0x40] sm:$0xf]
          %v599 = vld [vmem:[%s1 + $0x44] sm:$0xf]
          %v600 = vld [vmem:[%s1 + $0x48] sm:$0xf]
          %v601 = vld [vmem:[%s1 + $0x4c] sm:$0xf]
          %v602 = vld [vmem:[%s1 + $0x50] sm:$0xf]
          %v603 = vld [vmem:[%s1 + $0x54] sm:$0xf]
          %v604 = vld [vmem:[%s1 + $0x58] sm:$0xf]
          %v605 = vld [vmem:[%s1 + $0x5c] sm:$0xf]
          %v606 = vld [vmem:[%s1 + $0x60] sm:$0xf]
          %v607 = vld [vmem:[%s1 + $0x64] sm:$0xf]
          %v608 = vld [vmem:[%s1 + $0x68] sm:$0xf]
          %v609 = vld [vmem:[%s1 + $0x6c] sm:$0xf]
          %v610 = vld [vmem:[%s1 + $0x70] sm:$0xf]
          %v611 = vld [vmem:[%s1 + $0x74] sm:$0xf]
          %v612 = vld [vmem:[%s1 + $0x78] sm:$0xf]
          %v613 = vld [vmem:[%s1 + $0x7c] sm:$0xf]
          %v646 = vunpack.c.l.b16 %v582
          %v647 = vunpack.c.l.b16 %v583
          %v648 = vunpack.c.l.b16 %v584
          %v649 = vunpack.c.l.b16 %v585
          %v650 = vunpack.c.l.b16 %v586
          %v651 = vunpack.c.l.b16 %v587
          %v652 = vunpack.c.l.b16 %v588
          %v653 = vunpack.c.l.b16 %v589
          %v654 = vunpack.c.l.b16 %v590
          %v655 = vunpack.c.l.b16 %v591
          %v656 = vunpack.c.l.b16 %v592
          %v657 = vunpack.c.l.b16 %v593
          %v658 = vunpack.c.l.b16 %v594
          %v659 = vunpack.c.l.b16 %v595
          %v660 = vunpack.c.l.b16 %v596
          %v661 = vunpack.c.l.b16 %v597
          %v662 = vunpack.c.l.b16 %v598
          %v663 = vunpack.c.l.b16 %v599
          %v664 = vunpack.c.l.b16 %v600
          %v665 = vunpack.c.l.b16 %v601
          %v666 = vunpack.c.l.b16 %v602
          %v667 = vunpack.c.l.b16 %v603
          %v668 = vunpack.c.l.b16 %v604
          %v669 = vunpack.c.l.b16 %v605
          %v670 = vunpack.c.l.b16 %v606
          %v671 = vunpack.c.l.b16 %v607
          %v672 = vunpack.c.l.b16 %v608
          %v673 = vunpack.c.l.b16 %v609
          %v674 = vunpack.c.l.b16 %v610
          %v675 = vunpack.c.l.b16 %v611
          %v676 = vunpack.c.l.b16 %v612
          %v677 = vunpack.c.l.b16 %v613
          %v678 = vpack.c.b16 %v647, %v646
          %v679 = vpack.c.b16 %v649, %v648
          %v680 = vpack.c.b16 %v651, %v650
          %v681 = vpack.c.b16 %v653, %v652
          %v682 = vpack.c.b16 %v655, %v654
          %v683 = vpack.c.b16 %v657, %v656
          %v684 = vpack.c.b16 %v659, %v658
          %v685 = vpack.c.b16 %v661, %v660
          %v686 = vpack.c.b16 %v663, %v662
          %v687 = vpack.c.b16 %v665, %v664
          %v688 = vpack.c.b16 %v667, %v666
          %v689 = vpack.c.b16 %v669, %v668
          %v690 = vpack.c.b16 %v671, %v670
          %v691 = vpack.c.b16 %v673, %v672
          %v692 = vpack.c.b16 %v675, %v674
          %v693 = vpack.c.b16 %v677, %v676
          %710 = vmatprep.subr.bf16.mxu0 0
          %711 = vmatpush1.bf16.msra.mxu0 %v678
          %712 = vmatprep.subr.bf16.mxu0 0
          %713 = vmatpush1.bf16.msra.mxu0 %v679
          %714 = vmatprep.subr.bf16.mxu0 0
          %715 = vmatpush1.bf16.msra.mxu0 %v680
          %716 = vmatprep.subr.bf16.mxu0 0
          %717 = vmatpush1.bf16.msra.mxu0 %v681
          %718 = vmatprep.subr.bf16.mxu0 0
          %719 = vmatpush1.bf16.msra.mxu0 %v682
          %720 = vmatprep.subr.bf16.mxu0 0
          %721 = vmatpush1.bf16.msra.mxu0 %v683
          %722 = vmatprep.subr.bf16.mxu0 0
          %723 = vmatpush1.bf16.msra.mxu0 %v684
          %724 = vmatprep.subr.bf16.mxu0 0
          %725 = vmatpush1.bf16.msra.mxu0 %v685
          %726 = vmatprep.subr.bf16.mxu0 0
          %727 = vmatpush1.bf16.msra.mxu0 %v686
          %728 = vmatprep.subr.bf16.mxu0 0
          %729 = vmatpush1.bf16.msra.mxu0 %v687
          %730 = vmatprep.subr.bf16.mxu0 0
          %731 = vmatpush1.bf16.msra.mxu0 %v688
          %732 = vmatprep.subr.bf16.mxu0 0
          %733 = vmatpush1.bf16.msra.mxu0 %v689
          %734 = vmatprep.subr.bf16.mxu0 0
          %735 = vmatpush1.bf16.msra.mxu0 %v690
          %736 = vmatprep.subr.bf16.mxu0 0
          %737 = vmatpush1.bf16.msra.mxu0 %v691
          %738 = vmatprep.subr.bf16.mxu0 0
          %739 = vmatpush1.bf16.msra.mxu0 %v692
          %740 = vmatprep.subr.bf16.mxu0 0
          %741 = vmatpush1.bf16.msra.mxu0 %v693
          %742 = vmatprep.mubr.bf16.mxu0 %v581
          %743 = vmatmul.mubr.bf16.gmra.mrb[0].mxu0 %v580
          %v744 = vpop.f32.mrb[0].mxu0
          %v745 = vadd.f32 0.0, %v744
          %v746 = vpop.f32.mrb[0].mxu0
          %v747 = vpop.f32.mrb[0].mxu0
          %v748 = vadd.f32 0.0, %v747
          %v749 = vpop.f32.mrb[0].mxu0
          %750 = vdwg.mxu0
          %v751 = vpack.c.bf16 %v748, %v745
          %v752 = vld [vmem:[#allocation13] sm:$0xff]
          %v753 = vld [vmem:[#allocation13 + $0x8] sm:$0xff]
          %v754 = vld [vmem:[#allocation15] sm:$0xff]
          %v755 = vld [vmem:[#allocation15 + $0x8] sm:$0xff]
          %v756 = vpack.c.bf16 %v753, %v752
          %v757 = vld [vmem:[#allocation8] sm:$0xff]
          %v758 = vld [vmem:[#allocation8 + $0x8] sm:$0xff]
          %v759 = vld [vmem:[#allocation8 + $0x10] sm:$0xff]
          %v760 = vld [vmem:[#allocation8 + $0x18] sm:$0xff]
          %v761 = vld [vmem:[#allocation8 + $0x20] sm:$0xff]
          %v762 = vld [vmem:[#allocation8 + $0x28] sm:$0xff]
          %v763 = vld [vmem:[#allocation8 + $0x30] sm:$0xff]
          %v764 = vld [vmem:[#allocation8 + $0x38] sm:$0xff]
          %v765 = vld [vmem:[#allocation8 + $0x40] sm:$0xff]
          %v766 = vld [vmem:[#allocation8 + $0x48] sm:$0xff]
          %v767 = vld [vmem:[#allocation8 + $0x50] sm:$0xff]
          %v768 = vld [vmem:[#allocation8 + $0x58] sm:$0xff]
          %v769 = vld [vmem:[#allocation8 + $0x60] sm:$0xff]
          %v770 = vld [vmem:[#allocation8 + $0x68] sm:$0xff]
          %v771 = vld [vmem:[#allocation8 + $0x70] sm:$0xff]
          %v772 = vld [vmem:[#allocation8 + $0x78] sm:$0xff]
          %v773 = vld [vmem:[#allocation8 + $0x80] sm:$0xff]
          %v774 = vld [vmem:[#allocation8 + $0x88] sm:$0xff]
          %v775 = vld [vmem:[#allocation8 + $0x90] sm:$0xff]
          %v776 = vld [vmem:[#allocation8 + $0x98] sm:$0xff]
          %v777 = vld [vmem:[#allocation8 + $0xa0] sm:$0xff]
          %v778 = vld [vmem:[#allocation8 + $0xa8] sm:$0xff]
          %v779 = vld [vmem:[#allocation8 + $0xb0] sm:$0xff]
          %v780 = vld [vmem:[#allocation8 + $0xb8] sm:$0xff]
          %v781 = vld [vmem:[#allocation8 + $0xc0] sm:$0xff]
          %v782 = vld [vmem:[#allocation8 + $0xc8] sm:$0xff]
          %v783 = vld [vmem:[#allocation8 + $0xd0] sm:$0xff]
          %v784 = vld [vmem:[#allocation8 + $0xd8] sm:$0xff]
          %v785 = vld [vmem:[#allocation8 + $0xe0] sm:$0xff]
          %v786 = vld [vmem:[#allocation8 + $0xe8] sm:$0xff]
          %v787 = vld [vmem:[#allocation8 + $0xf0] sm:$0xff]
          %v788 = vld [vmem:[#allocation8 + $0xf8] sm:$0xff]
          %v789 = vld [vmem:[#allocation8 + $0x100] sm:$0xff]
          %v790 = vld [vmem:[#allocation8 + $0x108] sm:$0xff]
          %v791 = vld [vmem:[#allocation8 + $0x110] sm:$0xff]
          %v792 = vld [vmem:[#allocation8 + $0x118] sm:$0xff]
          %v793 = vld [vmem:[#allocation8 + $0x120] sm:$0xff]
          %v794 = vld [vmem:[#allocation8 + $0x128] sm:$0xff]
          %v795 = vld [vmem:[#allocation8 + $0x130] sm:$0xff]
          %v796 = vld [vmem:[#allocation8 + $0x138] sm:$0xff]
          %v797 = vld [vmem:[#allocation8 + $0x140] sm:$0xff]
          %v798 = vld [vmem:[#allocation8 + $0x148] sm:$0xff]
          %v799 = vld [vmem:[#allocation8 + $0x150] sm:$0xff]
          %v800 = vld [vmem:[#allocation8 + $0x158] sm:$0xff]
          %v801 = vld [vmem:[#allocation8 + $0x160] sm:$0xff]
          %v802 = vld [vmem:[#allocation8 + $0x168] sm:$0xff]
          %v803 = vld [vmem:[#allocation8 + $0x170] sm:$0xff]
          %v804 = vld [vmem:[#allocation8 + $0x178] sm:$0xff]
          %v805 = vld [vmem:[#allocation8 + $0x180] sm:$0xff]
          %v806 = vld [vmem:[#allocation8 + $0x188] sm:$0xff]
          %v807 = vld [vmem:[#allocation8 + $0x190] sm:$0xff]
          %v808 = vld [vmem:[#allocation8 + $0x198] sm:$0xff]
          %v809 = vld [vmem:[#allocation8 + $0x1a0] sm:$0xff]
          %v810 = vld [vmem:[#allocation8 + $0x1a8] sm:$0xff]
          %v811 = vld [vmem:[#allocation8 + $0x1b0] sm:$0xff]
          %v812 = vld [vmem:[#allocation8 + $0x1b8] sm:$0xff]
          %v813 = vld [vmem:[#allocation8 + $0x1c0] sm:$0xff]
          %v814 = vld [vmem:[#allocation8 + $0x1c8] sm:$0xff]
          %v815 = vld [vmem:[#allocation8 + $0x1d0] sm:$0xff]
          %v816 = vld [vmem:[#allocation8 + $0x1d8] sm:$0xff]
          %v817 = vld [vmem:[#allocation8 + $0x1e0] sm:$0xff]
          %v818 = vld [vmem:[#allocation8 + $0x1e8] sm:$0xff]
          %v819 = vld [vmem:[#allocation8 + $0x1f0] sm:$0xff]
          %v820 = vld [vmem:[#allocation8 + $0x1f8] sm:$0xff]
          %v821 = vld [vmem:[%s6] sm:$0xf]
          %v823 = vlaneseq
          %v824 = vshrl.u32 %v823, 7
          %v825 = vsub.s32 0, %v824
          %v826 = vrot.slane %v821, %v825
          %v827 = vlaneseq
          %v828 = vshrl.u32 %v827, 7
          %v829 = vsub.s32 1, %v828
          %v830 = vrot.slane %v821, %v829
          %v831 = vlaneseq
          %v832 = vshrl.u32 %v831, 7
          %v833 = vsub.s32 2, %v832
          %v834 = vrot.slane %v821, %v833
          %v835 = vlaneseq
          %v836 = vshrl.u32 %v835, 7
          %v837 = vsub.s32 3, %v836
          %v838 = vrot.slane %v821, %v837
          %v907 = vunpack.c.l.b16 %v757
          %v908 = vunpack.c.h.b16 %v757
          %v909 = vunpack.c.l.b16 %v758
          %v910 = vunpack.c.h.b16 %v758
          %v911 = vunpack.c.l.b16 %v759
          %v912 = vunpack.c.h.b16 %v759
          %v913 = vunpack.c.l.b16 %v760
          %v914 = vunpack.c.h.b16 %v760
          %v915 = vunpack.c.l.b16 %v761
          %v916 = vunpack.c.h.b16 %v761
          %v917 = vunpack.c.l.b16 %v762
          %v918 = vunpack.c.h.b16 %v762
          %v919 = vunpack.c.l.b16 %v763
          %v920 = vunpack.c.h.b16 %v763
          %v921 = vunpack.c.l.b16 %v764
          %v922 = vunpack.c.h.b16 %v764
          %v923 = vunpack.c.l.b16 %v765
          %v924 = vunpack.c.h.b16 %v765
          %v925 = vunpack.c.l.b16 %v766
          %v926 = vunpack.c.h.b16 %v766
          %v927 = vunpack.c.l.b16 %v767
          %v928 = vunpack.c.h.b16 %v767
          %v929 = vunpack.c.l.b16 %v768
          %v930 = vunpack.c.h.b16 %v768
          %v931 = vunpack.c.l.b16 %v769
          %v932 = vunpack.c.h.b16 %v769
          %v933 = vunpack.c.l.b16 %v770
          %v934 = vunpack.c.h.b16 %v770
          %v935 = vunpack.c.l.b16 %v771
          %v936 = vunpack.c.h.b16 %v771
          %v937 = vunpack.c.l.b16 %v772
          %v938 = vunpack.c.h.b16 %v772
          %v939 = vunpack.c.l.b16 %v773
          %v940 = vunpack.c.h.b16 %v773
          %v941 = vunpack.c.l.b16 %v774
          %v942 = vunpack.c.h.b16 %v774
          %v943 = vunpack.c.l.b16 %v775
          %v944 = vunpack.c.h.b16 %v775
          %v945 = vunpack.c.l.b16 %v776
          %v946 = vunpack.c.h.b16 %v776
          %v947 = vunpack.c.l.b16 %v777
          %v948 = vunpack.c.h.b16 %v777
          %v949 = vunpack.c.l.b16 %v778
          %v950 = vunpack.c.h.b16 %v778
          %v951 = vunpack.c.l.b16 %v779
          %v952 = vunpack.c.h.b16 %v779
          %v953 = vunpack.c.l.b16 %v780
          %v954 = vunpack.c.h.b16 %v780
          %v955 = vunpack.c.l.b16 %v781
          %v956 = vunpack.c.h.b16 %v781
          %v957 = vunpack.c.l.b16 %v782
          %v958 = vunpack.c.h.b16 %v782
          %v959 = vunpack.c.l.b16 %v783
          %v960 = vunpack.c.h.b16 %v783
          %v961 = vunpack.c.l.b16 %v784
          %v962 = vunpack.c.h.b16 %v784
          %v963 = vunpack.c.l.b16 %v785
          %v964 = vunpack.c.h.b16 %v785
          %v965 = vunpack.c.l.b16 %v786
          %v966 = vunpack.c.h.b16 %v786
          %v967 = vunpack.c.l.b16 %v787
          %v968 = vunpack.c.h.b16 %v787
          %v969 = vunpack.c.l.b16 %v788
          %v970 = vunpack.c.h.b16 %v788
          %v971 = vunpack.c.l.b16 %v789
          %v972 = vunpack.c.h.b16 %v789
          %v973 = vunpack.c.l.b16 %v790
          %v974 = vunpack.c.h.b16 %v790
          %v975 = vunpack.c.l.b16 %v791
          %v976 = vunpack.c.h.b16 %v791
          %v977 = vunpack.c.l.b16 %v792
          %v978 = vunpack.c.h.b16 %v792
          %v979 = vunpack.c.l.b16 %v793
          %v980 = vunpack.c.h.b16 %v793
          %v981 = vunpack.c.l.b16 %v794
          %v982 = vunpack.c.h.b16 %v794
          %v983 = vunpack.c.l.b16 %v795
          %v984 = vunpack.c.h.b16 %v795
          %v985 = vunpack.c.l.b16 %v796
          %v986 = vunpack.c.h.b16 %v796
          %v987 = vunpack.c.l.b16 %v797
          %v988 = vunpack.c.h.b16 %v797
          %v989 = vunpack.c.l.b16 %v798
          %v990 = vunpack.c.h.b16 %v798
          %v991 = vunpack.c.l.b16 %v799
          %v992 = vunpack.c.h.b16 %v799
          %v993 = vunpack.c.l.b16 %v800
          %v994 = vunpack.c.h.b16 %v800
          %v995 = vunpack.c.l.b16 %v801
          %v996 = vunpack.c.h.b16 %v801
          %v997 = vunpack.c.l.b16 %v802
          %v998 = vunpack.c.h.b16 %v802
          %v999 = vunpack.c.l.b16 %v803
          %v1000 = vunpack.c.h.b16 %v803
          %v1001 = vunpack.c.l.b16 %v804
          %v1002 = vunpack.c.h.b16 %v804
          %v1003 = vunpack.c.l.b16 %v805
          %v1004 = vunpack.c.h.b16 %v805
          %v1005 = vunpack.c.l.b16 %v806
          %v1006 = vunpack.c.h.b16 %v806
          %v1007 = vunpack.c.l.b16 %v807
          %v1008 = vunpack.c.h.b16 %v807
          %v1009 = vunpack.c.l.b16 %v808
          %v1010 = vunpack.c.h.b16 %v808
          %v1011 = vunpack.c.l.b16 %v809
          %v1012 = vunpack.c.h.b16 %v809
          %v1013 = vunpack.c.l.b16 %v810
          %v1014 = vunpack.c.h.b16 %v810
          %v1015 = vunpack.c.l.b16 %v811
          %v1016 = vunpack.c.h.b16 %v811
          %v1017 = vunpack.c.l.b16 %v812
          %v1018 = vunpack.c.h.b16 %v812
          %v1019 = vunpack.c.l.b16 %v813
          %v1020 = vunpack.c.h.b16 %v813
          %v1021 = vunpack.c.l.b16 %v814
          %v1022 = vunpack.c.h.b16 %v814
          %v1023 = vunpack.c.l.b16 %v815
          %v1024 = vunpack.c.h.b16 %v815
          %v1025 = vunpack.c.l.b16 %v816
          %v1026 = vunpack.c.h.b16 %v816
          %v1027 = vunpack.c.l.b16 %v817
          %v1028 = vunpack.c.h.b16 %v817
          %v1029 = vunpack.c.l.b16 %v818
          %v1030 = vunpack.c.h.b16 %v818
          %v1031 = vunpack.c.l.b16 %v819
          %v1032 = vunpack.c.h.b16 %v819
          %v1033 = vunpack.c.l.b16 %v820
          %v1034 = vunpack.c.h.b16 %v820
          %v1035 = vpack.c.b16 %v911, %v907
          %v1036 = vpack.c.b16 %v912, %v908
          %v1037 = vpack.c.b16 %v913, %v909
          %v1038 = vpack.c.b16 %v914, %v910
          %v1039 = vpack.c.b16 %v919, %v915
          %v1040 = vpack.c.b16 %v920, %v916
          %v1041 = vpack.c.b16 %v921, %v917
          %v1042 = vpack.c.b16 %v922, %v918
          %v1043 = vpack.c.b16 %v927, %v923
          %v1044 = vpack.c.b16 %v928, %v924
          %v1045 = vpack.c.b16 %v929, %v925
          %v1046 = vpack.c.b16 %v930, %v926
          %v1047 = vpack.c.b16 %v935, %v931
          %v1048 = vpack.c.b16 %v936, %v932
          %v1049 = vpack.c.b16 %v937, %v933
          %v1050 = vpack.c.b16 %v938, %v934
          %v1051 = vpack.c.b16 %v943, %v939
          %v1052 = vpack.c.b16 %v944, %v940
          %v1053 = vpack.c.b16 %v945, %v941
          %v1054 = vpack.c.b16 %v946, %v942
          %v1055 = vpack.c.b16 %v951, %v947
          %v1056 = vpack.c.b16 %v952, %v948
          %v1057 = vpack.c.b16 %v953, %v949
          %v1058 = vpack.c.b16 %v954, %v950
          %v1059 = vpack.c.b16 %v959, %v955
          %v1060 = vpack.c.b16 %v960, %v956
          %v1061 = vpack.c.b16 %v961, %v957
          %v1062 = vpack.c.b16 %v962, %v958
          %v1063 = vpack.c.b16 %v967, %v963
          %v1064 = vpack.c.b16 %v968, %v964
          %v1065 = vpack.c.b16 %v969, %v965
          %v1066 = vpack.c.b16 %v970, %v966
          %v1067 = vpack.c.b16 %v975, %v971
          %v1068 = vpack.c.b16 %v976, %v972
          %v1069 = vpack.c.b16 %v977, %v973
          %v1070 = vpack.c.b16 %v978, %v974
          %v1071 = vpack.c.b16 %v983, %v979
          %v1072 = vpack.c.b16 %v984, %v980
          %v1073 = vpack.c.b16 %v985, %v981
          %v1074 = vpack.c.b16 %v986, %v982
          %v1075 = vpack.c.b16 %v991, %v987
          %v1076 = vpack.c.b16 %v992, %v988
          %v1077 = vpack.c.b16 %v993, %v989
          %v1078 = vpack.c.b16 %v994, %v990
          %v1079 = vpack.c.b16 %v999, %v995
          %v1080 = vpack.c.b16 %v1000, %v996
          %v1081 = vpack.c.b16 %v1001, %v997
          %v1082 = vpack.c.b16 %v1002, %v998
          %v1083 = vpack.c.b16 %v1007, %v1003
          %v1084 = vpack.c.b16 %v1008, %v1004
          %v1085 = vpack.c.b16 %v1009, %v1005
          %v1086 = vpack.c.b16 %v1010, %v1006
          %v1087 = vpack.c.b16 %v1015, %v1011
          %v1088 = vpack.c.b16 %v1016, %v1012
          %v1089 = vpack.c.b16 %v1017, %v1013
          %v1090 = vpack.c.b16 %v1018, %v1014
          %v1091 = vpack.c.b16 %v1023, %v1019
          %v1092 = vpack.c.b16 %v1024, %v1020
          %v1093 = vpack.c.b16 %v1025, %v1021
          %v1094 = vpack.c.b16 %v1026, %v1022
          %v1095 = vpack.c.b16 %v1031, %v1027
          %v1096 = vpack.c.b16 %v1032, %v1028
          %v1097 = vpack.c.b16 %v1033, %v1029
          %v1098 = vpack.c.b16 %v1034, %v1030
          %1163 = vmatprep.subr.bf16.mxu0 %v1036
          %1164 = vmatpush1.bf16.msra.mxu0 %v1035
          %1165 = vmatprep.subr.bf16.mxu0 %v1040
          %1166 = vmatpush1.bf16.msra.mxu0 %v1039
          %1167 = vmatprep.subr.bf16.mxu0 %v1044
          %1168 = vmatpush1.bf16.msra.mxu0 %v1043
          %1169 = vmatprep.subr.bf16.mxu0 %v1048
          %1170 = vmatpush1.bf16.msra.mxu0 %v1047
          %1171 = vmatprep.subr.bf16.mxu0 %v1052
          %1172 = vmatpush1.bf16.msra.mxu0 %v1051
          %1173 = vmatprep.subr.bf16.mxu0 %v1056
          %1174 = vmatpush1.bf16.msra.mxu0 %v1055
          %1175 = vmatprep.subr.bf16.mxu0 %v1060
          %1176 = vmatpush1.bf16.msra.mxu0 %v1059
          %1177 = vmatprep.subr.bf16.mxu0 %v1064
          %1178 = vmatpush1.bf16.msra.mxu0 %v1063
          %1179 = vmatprep.subr.bf16.mxu0 %v1068
          %1180 = vmatpush1.bf16.msra.mxu0 %v1067
          %1181 = vmatprep.subr.bf16.mxu0 %v1072
          %1182 = vmatpush1.bf16.msra.mxu0 %v1071
          %1183 = vmatprep.subr.bf16.mxu0 %v1076
          %1184 = vmatpush1.bf16.msra.mxu0 %v1075
          %1185 = vmatprep.subr.bf16.mxu0 %v1080
          %1186 = vmatpush1.bf16.msra.mxu0 %v1079
          %1187 = vmatprep.subr.bf16.mxu0 %v1084
          %1188 = vmatpush1.bf16.msra.mxu0 %v1083
          %1189 = vmatprep.subr.bf16.mxu0 %v1088
          %1190 = vmatpush1.bf16.msra.mxu0 %v1087
          %1191 = vmatprep.subr.bf16.mxu0 %v1092
          %1192 = vmatpush1.bf16.msra.mxu0 %v1091
          %1193 = vmatprep.subr.bf16.mxu0 %v1096
          %1194 = vmatpush1.bf16.msra.mxu0 %v1095
          %1195 = vmatprep.mubr.bf16.mxu0 %v756
          %1196 = vmatmul.mubr.bf16.gmra.mrb[0].mxu0 %v751
          %v1197 = vpop.f32.mrb[0].mxu0
          %v1198 = vadd.f32 %v826, %v1197
          %v1199 = vpop.f32.mrb[0].mxu0
          %v1200 = vadd.f32 %v830, %v1199
          %v1201 = vpop.f32.mrb[0].mxu0
          %v1202 = vadd.f32 %v826, %v1201
          %v1203 = vpop.f32.mrb[0].mxu0
          %v1204 = vadd.f32 %v830, %v1203
          %1205 = vdwg.mxu0
          %1206 = vmatprep.subr.bf16.mxu0 %v1038
          %1207 = vmatpush1.bf16.msra.mxu0 %v1037
          %1208 = vmatprep.subr.bf16.mxu0 %v1042
          %1209 = vmatpush1.bf16.msra.mxu0 %v1041
          %1210 = vmatprep.subr.bf16.mxu0 %v1046
          %1211 = vmatpush1.bf16.msra.mxu0 %v1045
          %1212 = vmatprep.subr.bf16.mxu0 %v1050
          %1213 = vmatpush1.bf16.msra.mxu0 %v1049
          %1214 = vmatprep.subr.bf16.mxu0 %v1054
          %1215 = vmatpush1.bf16.msra.mxu0 %v1053
          %1216 = vmatprep.subr.bf16.mxu0 %v1058
          %1217 = vmatpush1.bf16.msra.mxu0 %v1057
          %1218 = vmatprep.subr.bf16.mxu0 %v1062
          %1219 = vmatpush1.bf16.msra.mxu0 %v1061
          %1220 = vmatprep.subr.bf16.mxu0 %v1066
          %1221 = vmatpush1.bf16.msra.mxu0 %v1065
          %1222 = vmatprep.subr.bf16.mxu0 %v1070
          %1223 = vmatpush1.bf16.msra.mxu0 %v1069
          %1224 = vmatprep.subr.bf16.mxu0 %v1074
          %1225 = vmatpush1.bf16.msra.mxu0 %v1073
          %1226 = vmatprep.subr.bf16.mxu0 %v1078
          %1227 = vmatpush1.bf16.msra.mxu0 %v1077
          %1228 = vmatprep.subr.bf16.mxu0 %v1082
          %1229 = vmatpush1.bf16.msra.mxu0 %v1081
          %1230 = vmatprep.subr.bf16.mxu0 %v1086
          %1231 = vmatpush1.bf16.msra.mxu0 %v1085
          %1232 = vmatprep.subr.bf16.mxu0 %v1090
          %1233 = vmatpush1.bf16.msra.mxu0 %v1089
          %1234 = vmatprep.subr.bf16.mxu0 %v1094
          %1235 = vmatpush1.bf16.msra.mxu0 %v1093
          %1236 = vmatprep.subr.bf16.mxu0 %v1098
          %1237 = vmatpush1.bf16.msra.mxu0 %v1097
          %1238 = vmatprep.mubr.bf16.mxu0 %v756
          %1239 = vmatmul.mubr.bf16.gmra.mrb[0].mxu0 %v751
          %v1240 = vpop.f32.mrb[0].mxu0
          %v1241 = vadd.f32 %v834, %v1240
          %v1242 = vpop.f32.mrb[0].mxu0
          %v1243 = vadd.f32 %v838, %v1242
          %v1244 = vpop.f32.mrb[0].mxu0
          %v1245 = vadd.f32 %v834, %v1244
          %v1246 = vpop.f32.mrb[0].mxu0
          %v1247 = vadd.f32 %v838, %v1246
          %1248 = vdwg.mxu0
          %v1249 = vxor.u32 %v1198, 2147483648
          %v1250 = vxor.u32 %v1202, 2147483648
          %v1251 = vmul.f32 %v1249, 1.442695
          %v1252 = vpow.pop %v1251
          %v1253 = vmul.f32 %v1250, 1.442695
          %v1254 = vpow.pop %v1253
          %v1255 = vadd.f32 %v1252, 1.0
          %v1256 = vadd.f32 %v1254, 1.0
          %v1257 = vrcp.pop %v1255
          %v1258 = vmul.f32 1.0, %v1257
          %v1259 = vrcp.pop %v1256
          %v1260 = vmul.f32 1.0, %v1259
          %v1261 = vxor.u32 %v1200, 2147483648
          %v1262 = vxor.u32 %v1204, 2147483648
          %v1263 = vmul.f32 %v1261, 1.442695
          %v1264 = vpow.pop %v1263
          %v1265 = vmul.f32 %v1262, 1.442695
          %v1266 = vpow.pop %v1265
          %v1267 = vadd.f32 %v1264, 1.0
          %v1268 = vadd.f32 %v1266, 1.0
          %v1269 = vrcp.pop %v1267
          %v1270 = vmul.f32 1.0, %v1269
          %v1271 = vrcp.pop %v1268
          %v1272 = vmul.f32 1.0, %v1271
          %v1273 = vtanh.pop %v1241
          %v1274 = vtanh.pop %v1245
          %v1275 = vxor.u32 %v1243, 2147483648
          %v1276 = vxor.u32 %v1247, 2147483648
          %v1277 = vmul.f32 %v1275, 1.442695
          %v1278 = vpow.pop %v1277
          %v1279 = vmul.f32 %v1276, 1.442695
          %v1280 = vpow.pop %v1279
          %v1281 = vadd.f32 %v1278, 1.0
          %v1282 = vadd.f32 %v1280, 1.0
          %v1283 = vrcp.pop %v1281
          %v1284 = vmul.f32 1.0, %v1283
          %v1285 = vrcp.pop %v1282
          %v1286 = vmul.f32 1.0, %v1285
          %v1287 = vmul.f32 %v1270, %v754
          %v1288 = vmul.f32 %v1272, %v755
          %v1289 = vmul.f32 %v1258, %v1273
          %v1290 = vmul.f32 %v1260, %v1274
          %v1291 = vadd.f32 %v1287, %v1289
          %v1292 = vadd.f32 %v1288, %v1290
          %v1293 = vtanh.pop %v1291
          %v1294 = vtanh.pop %v1292
          %v1295 = vmul.f32 %v1284, %v1293
          %v1296 = vmul.f32 %v1286, %v1294
          %1297 = vst [vmem:[#allocation13] sm:$0xff] %v1295
          %1298 = vst [vmem:[#allocation13 + $0x8] sm:$0xff] %v1296
          %1299 = vst [vmem:[#allocation15] sm:$0xff] %v1291
          %1300 = vst [vmem:[#allocation15 + $0x8] sm:$0xff] %v1292
          %v1301 = vpack.c.bf16 %v1296, %v1295
          %s1302 = scalar_lea.vmem [#allocation13], 16
          %v1303 = vld [vmem:[%s1302] sm:$0xff]
          %v1304 = vld [vmem:[%s1302 + $0x8] sm:$0xff]
          %s1305 = scalar_lea.vmem [#allocation15], 16
          %v1306 = vld [vmem:[%s1305] sm:$0xff]
          %v1307 = vld [vmem:[%s1305 + $0x8] sm:$0xff]
          %v1308 = vpack.c.bf16 %v1304, %v1303
          %v1309 = vld [vmem:[#allocation9] sm:$0xff]
          %v1310 = vld [vmem:[#allocation9 + $0x8] sm:$0xff]
          %v1311 = vld [vmem:[#allocation9 + $0x10] sm:$0xff]
          %v1312 = vld [vmem:[#allocation9 + $0x18] sm:$0xff]
          %v1313 = vld [vmem:[#allocation9 + $0x20] sm:$0xff]
          %v1314 = vld [vmem:[#allocation9 + $0x28] sm:$0xff]
          %v1315 = vld [vmem:[#allocation9 + $0x30] sm:$0xff]
          %v1316 = vld [vmem:[#allocation9 + $0x38] sm:$0xff]
          %v1317 = vld [vmem:[#allocation9 + $0x40] sm:$0xff]
          %v1318 = vld [vmem:[#allocation9 + $0x48] sm:$0xff]
          %v1319 = vld [vmem:[#allocation9 + $0x50] sm:$0xff]
          %v1320 = vld [vmem:[#allocation9 + $0x58] sm:$0xff]
          %v1321 = vld [vmem:[#allocation9 + $0x60] sm:$0xff]
          %v1322 = vld [vmem:[#allocation9 + $0x68] sm:$0xff]
          %v1323 = vld [vmem:[#allocation9 + $0x70] sm:$0xff]
          %v1324 = vld [vmem:[#allocation9 + $0x78] sm:$0xff]
          %v1325 = vld [vmem:[#allocation9 + $0x80] sm:$0xff]
          %v1326 = vld [vmem:[#allocation9 + $0x88] sm:$0xff]
          %v1327 = vld [vmem:[#allocation9 + $0x90] sm:$0xff]
          %v1328 = vld [vmem:[#allocation9 + $0x98] sm:$0xff]
          %v1329 = vld [vmem:[#allocation9 + $0xa0] sm:$0xff]
          %v1330 = vld [vmem:[#allocation9 + $0xa8] sm:$0xff]
          %v1331 = vld [vmem:[#allocation9 + $0xb0] sm:$0xff]
          %v1332 = vld [vmem:[#allocation9 + $0xb8] sm:$0xff]
          %v1333 = vld [vmem:[#allocation9 + $0xc0] sm:$0xff]
          %v1334 = vld [vmem:[#allocation9 + $0xc8] sm:$0xff]
          %v1335 = vld [vmem:[#allocation9 + $0xd0] sm:$0xff]
          %v1336 = vld [vmem:[#allocation9 + $0xd8] sm:$0xff]
          %v1337 = vld [vmem:[#allocation9 + $0xe0] sm:$0xff]
          %v1338 = vld [vmem:[#allocation9 + $0xe8] sm:$0xff]
          %v1339 = vld [vmem:[#allocation9 + $0xf0] sm:$0xff]
          %v1340 = vld [vmem:[#allocation9 + $0xf8] sm:$0xff]
          %v1341 = vld [vmem:[#allocation9 + $0x100] sm:$0xff]
          %v1342 = vld [vmem:[#allocation9 + $0x108] sm:$0xff]
          %v1343 = vld [vmem:[#allocation9 + $0x110] sm:$0xff]
          %v1344 = vld [vmem:[#allocation9 + $0x118] sm:$0xff]
          %v1345 = vld [vmem:[#allocation9 + $0x120] sm:$0xff]
          %v1346 = vld [vmem:[#allocation9 + $0x128] sm:$0xff]
          %v1347 = vld [vmem:[#allocation9 + $0x130] sm:$0xff]
          %v1348 = vld [vmem:[#allocation9 + $0x138] sm:$0xff]
          %v1349 = vld [vmem:[#allocation9 + $0x140] sm:$0xff]
          %v1350 = vld [vmem:[#allocation9 + $0x148] sm:$0xff]
          %v1351 = vld [vmem:[#allocation9 + $0x150] sm:$0xff]
          %v1352 = vld [vmem:[#allocation9 + $0x158] sm:$0xff]
          %v1353 = vld [vmem:[#allocation9 + $0x160] sm:$0xff]
          %v1354 = vld [vmem:[#allocation9 + $0x168] sm:$0xff]
          %v1355 = vld [vmem:[#allocation9 + $0x170] sm:$0xff]
          %v1356 = vld [vmem:[#allocation9 + $0x178] sm:$0xff]
          %v1357 = vld [vmem:[#allocation9 + $0x180] sm:$0xff]
          %v1358 = vld [vmem:[#allocation9 + $0x188] sm:$0xff]
          %v1359 = vld [vmem:[#allocation9 + $0x190] sm:$0xff]
          %v1360 = vld [vmem:[#allocation9 + $0x198] sm:$0xff]
          %v1361 = vld [vmem:[#allocation9 + $0x1a0] sm:$0xff]
          %v1362 = vld [vmem:[#allocation9 + $0x1a8] sm:$0xff]
          %v1363 = vld [vmem:[#allocation9 + $0x1b0] sm:$0xff]
          %v1364 = vld [vmem:[#allocation9 + $0x1b8] sm:$0xff]
          %v1365 = vld [vmem:[#allocation9 + $0x1c0] sm:$0xff]
          %v1366 = vld [vmem:[#allocation9 + $0x1c8] sm:$0xff]
          %v1367 = vld [vmem:[#allocation9 + $0x1d0] sm:$0xff]
          %v1368 = vld [vmem:[#allocation9 + $0x1d8] sm:$0xff]
          %v1369 = vld [vmem:[#allocation9 + $0x1e0] sm:$0xff]
          %v1370 = vld [vmem:[#allocation9 + $0x1e8] sm:$0xff]
          %v1371 = vld [vmem:[#allocation9 + $0x1f0] sm:$0xff]
          %v1372 = vld [vmem:[#allocation9 + $0x1f8] sm:$0xff]
          %v1373 = vld [vmem:[%s7] sm:$0xf]
          %v1375 = vlaneseq
          %v1376 = vshrl.u32 %v1375, 7
          %v1377 = vsub.s32 0, %v1376
          %v1378 = vrot.slane %v1373, %v1377
          %v1379 = vlaneseq
          %v1380 = vshrl.u32 %v1379, 7
          %v1381 = vsub.s32 1, %v1380
          %v1382 = vrot.slane %v1373, %v1381
          %v1383 = vlaneseq
          %v1384 = vshrl.u32 %v1383, 7
          %v1385 = vsub.s32 2, %v1384
          %v1386 = vrot.slane %v1373, %v1385
          %v1387 = vlaneseq
          %v1388 = vshrl.u32 %v1387, 7
          %v1389 = vsub.s32 3, %v1388
          %v1390 = vrot.slane %v1373, %v1389
          %v1459 = vunpack.c.l.b16 %v1309
          %v1460 = vunpack.c.h.b16 %v1309
          %v1461 = vunpack.c.l.b16 %v1310
          %v1462 = vunpack.c.h.b16 %v1310
          %v1463 = vunpack.c.l.b16 %v1311
          %v1464 = vunpack.c.h.b16 %v1311
          %v1465 = vunpack.c.l.b16 %v1312
          %v1466 = vunpack.c.h.b16 %v1312
          %v1467 = vunpack.c.l.b16 %v1313
          %v1468 = vunpack.c.h.b16 %v1313
          %v1469 = vunpack.c.l.b16 %v1314
          %v1470 = vunpack.c.h.b16 %v1314
          %v1471 = vunpack.c.l.b16 %v1315
          %v1472 = vunpack.c.h.b16 %v1315
          %v1473 = vunpack.c.l.b16 %v1316
          %v1474 = vunpack.c.h.b16 %v1316
          %v1475 = vunpack.c.l.b16 %v1317
          %v1476 = vunpack.c.h.b16 %v1317
          %v1477 = vunpack.c.l.b16 %v1318
          %v1478 = vunpack.c.h.b16 %v1318
          %v1479 = vunpack.c.l.b16 %v1319
          %v1480 = vunpack.c.h.b16 %v1319
          %v1481 = vunpack.c.l.b16 %v1320
          %v1482 = vunpack.c.h.b16 %v1320
          %v1483 = vunpack.c.l.b16 %v1321
          %v1484 = vunpack.c.h.b16 %v1321
          %v1485 = vunpack.c.l.b16 %v1322
          %v1486 = vunpack.c.h.b16 %v1322
          %v1487 = vunpack.c.l.b16 %v1323
          %v1488 = vunpack.c.h.b16 %v1323
          %v1489 = vunpack.c.l.b16 %v1324
          %v1490 = vunpack.c.h.b16 %v1324
          %v1491 = vunpack.c.l.b16 %v1325
          %v1492 = vunpack.c.h.b16 %v1325
          %v1493 = vunpack.c.l.b16 %v1326
          %v1494 = vunpack.c.h.b16 %v1326
          %v1495 = vunpack.c.l.b16 %v1327
          %v1496 = vunpack.c.h.b16 %v1327
          %v1497 = vunpack.c.l.b16 %v1328
          %v1498 = vunpack.c.h.b16 %v1328
          %v1499 = vunpack.c.l.b16 %v1329
          %v1500 = vunpack.c.h.b16 %v1329
          %v1501 = vunpack.c.l.b16 %v1330
          %v1502 = vunpack.c.h.b16 %v1330
          %v1503 = vunpack.c.l.b16 %v1331
          %v1504 = vunpack.c.h.b16 %v1331
          %v1505 = vunpack.c.l.b16 %v1332
          %v1506 = vunpack.c.h.b16 %v1332
          %v1507 = vunpack.c.l.b16 %v1333
          %v1508 = vunpack.c.h.b16 %v1333
          %v1509 = vunpack.c.l.b16 %v1334
          %v1510 = vunpack.c.h.b16 %v1334
          %v1511 = vunpack.c.l.b16 %v1335
          %v1512 = vunpack.c.h.b16 %v1335
          %v1513 = vunpack.c.l.b16 %v1336
          %v1514 = vunpack.c.h.b16 %v1336
          %v1515 = vunpack.c.l.b16 %v1337
          %v1516 = vunpack.c.h.b16 %v1337
          %v1517 = vunpack.c.l.b16 %v1338
          %v1518 = vunpack.c.h.b16 %v1338
          %v1519 = vunpack.c.l.b16 %v1339
          %v1520 = vunpack.c.h.b16 %v1339
          %v1521 = vunpack.c.l.b16 %v1340
          %v1522 = vunpack.c.h.b16 %v1340
          %v1523 = vunpack.c.l.b16 %v1341
          %v1524 = vunpack.c.h.b16 %v1341
          %v1525 = vunpack.c.l.b16 %v1342
          %v1526 = vunpack.c.h.b16 %v1342
          %v1527 = vunpack.c.l.b16 %v1343
          %v1528 = vunpack.c.h.b16 %v1343
          %v1529 = vunpack.c.l.b16 %v1344
          %v1530 = vunpack.c.h.b16 %v1344
          %v1531 = vunpack.c.l.b16 %v1345
          %v1532 = vunpack.c.h.b16 %v1345
          %v1533 = vunpack.c.l.b16 %v1346
          %v1534 = vunpack.c.h.b16 %v1346
          %v1535 = vunpack.c.l.b16 %v1347
          %v1536 = vunpack.c.h.b16 %v1347
          %v1537 = vunpack.c.l.b16 %v1348
          %v1538 = vunpack.c.h.b16 %v1348
          %v1539 = vunpack.c.l.b16 %v1349
          %v1540 = vunpack.c.h.b16 %v1349
          %v1541 = vunpack.c.l.b16 %v1350
          %v1542 = vunpack.c.h.b16 %v1350
          %v1543 = vunpack.c.l.b16 %v1351
          %v1544 = vunpack.c.h.b16 %v1351
          %v1545 = vunpack.c.l.b16 %v1352
          %v1546 = vunpack.c.h.b16 %v1352
          %v1547 = vunpack.c.l.b16 %v1353
          %v1548 = vunpack.c.h.b16 %v1353
          %v1549 = vunpack.c.l.b16 %v1354
          %v1550 = vunpack.c.h.b16 %v1354
          %v1551 = vunpack.c.l.b16 %v1355
          %v1552 = vunpack.c.h.b16 %v1355
          %v1553 = vunpack.c.l.b16 %v1356
          %v1554 = vunpack.c.h.b16 %v1356
          %v1555 = vunpack.c.l.b16 %v1357
          %v1556 = vunpack.c.h.b16 %v1357
          %v1557 = vunpack.c.l.b16 %v1358
          %v1558 = vunpack.c.h.b16 %v1358
          %v1559 = vunpack.c.l.b16 %v1359
          %v1560 = vunpack.c.h.b16 %v1359
          %v1561 = vunpack.c.l.b16 %v1360
          %v1562 = vunpack.c.h.b16 %v1360
          %v1563 = vunpack.c.l.b16 %v1361
          %v1564 = vunpack.c.h.b16 %v1361
          %v1565 = vunpack.c.l.b16 %v1362
          %v1566 = vunpack.c.h.b16 %v1362
          %v1567 = vunpack.c.l.b16 %v1363
          %v1568 = vunpack.c.h.b16 %v1363
          %v1569 = vunpack.c.l.b16 %v1364
          %v1570 = vunpack.c.h.b16 %v1364
          %v1571 = vunpack.c.l.b16 %v1365
          %v1572 = vunpack.c.h.b16 %v1365
          %v1573 = vunpack.c.l.b16 %v1366
          %v1574 = vunpack.c.h.b16 %v1366
          %v1575 = vunpack.c.l.b16 %v1367
          %v1576 = vunpack.c.h.b16 %v1367
          %v1577 = vunpack.c.l.b16 %v1368
          %v1578 = vunpack.c.h.b16 %v1368
          %v1579 = vunpack.c.l.b16 %v1369
          %v1580 = vunpack.c.h.b16 %v1369
          %v1581 = vunpack.c.l.b16 %v1370
          %v1582 = vunpack.c.h.b16 %v1370
          %v1583 = vunpack.c.l.b16 %v1371
          %v1584 = vunpack.c.h.b16 %v1371
          %v1585 = vunpack.c.l.b16 %v1372
          %v1586 = vunpack.c.h.b16 %v1372
          %v1587 = vpack.c.b16 %v1463, %v1459
          %v1588 = vpack.c.b16 %v1464, %v1460
          %v1589 = vpack.c.b16 %v1465, %v1461
          %v1590 = vpack.c.b16 %v1466, %v1462
          %v1591 = vpack.c.b16 %v1471, %v1467
          %v1592 = vpack.c.b16 %v1472, %v1468
          %v1593 = vpack.c.b16 %v1473, %v1469
          %v1594 = vpack.c.b16 %v1474, %v1470
          %v1595 = vpack.c.b16 %v1479, %v1475
          %v1596 = vpack.c.b16 %v1480, %v1476
          %v1597 = vpack.c.b16 %v1481, %v1477
          %v1598 = vpack.c.b16 %v1482, %v1478
          %v1599 = vpack.c.b16 %v1487, %v1483
          %v1600 = vpack.c.b16 %v1488, %v1484
          %v1601 = vpack.c.b16 %v1489, %v1485
          %v1602 = vpack.c.b16 %v1490, %v1486
          %v1603 = vpack.c.b16 %v1495, %v1491
          %v1604 = vpack.c.b16 %v1496, %v1492
          %v1605 = vpack.c.b16 %v1497, %v1493
          %v1606 = vpack.c.b16 %v1498, %v1494
          %v1607 = vpack.c.b16 %v1503, %v1499
          %v1608 = vpack.c.b16 %v1504, %v1500
          %v1609 = vpack.c.b16 %v1505, %v1501
          %v1610 = vpack.c.b16 %v1506, %v1502
          %v1611 = vpack.c.b16 %v1511, %v1507
          %v1612 = vpack.c.b16 %v1512, %v1508
          %v1613 = vpack.c.b16 %v1513, %v1509
          %v1614 = vpack.c.b16 %v1514, %v1510
          %v1615 = vpack.c.b16 %v1519, %v1515
          %v1616 = vpack.c.b16 %v1520, %v1516
          %v1617 = vpack.c.b16 %v1521, %v1517
          %v1618 = vpack.c.b16 %v1522, %v1518
          %v1619 = vpack.c.b16 %v1527, %v1523
          %v1620 = vpack.c.b16 %v1528, %v1524
          %v1621 = vpack.c.b16 %v1529, %v1525
          %v1622 = vpack.c.b16 %v1530, %v1526
          %v1623 = vpack.c.b16 %v1535, %v1531
          %v1624 = vpack.c.b16 %v1536, %v1532
          %v1625 = vpack.c.b16 %v1537, %v1533
          %v1626 = vpack.c.b16 %v1538, %v1534
          %v1627 = vpack.c.b16 %v1543, %v1539
          %v1628 = vpack.c.b16 %v1544, %v1540
          %v1629 = vpack.c.b16 %v1545, %v1541
          %v1630 = vpack.c.b16 %v1546, %v1542
          %v1631 = vpack.c.b16 %v1551, %v1547
          %v1632 = vpack.c.b16 %v1552, %v1548
          %v1633 = vpack.c.b16 %v1553, %v1549
          %v1634 = vpack.c.b16 %v1554, %v1550
          %v1635 = vpack.c.b16 %v1559, %v1555
          %v1636 = vpack.c.b16 %v1560, %v1556
          %v1637 = vpack.c.b16 %v1561, %v1557
          %v1638 = vpack.c.b16 %v1562, %v1558
          %v1639 = vpack.c.b16 %v1567, %v1563
          %v1640 = vpack.c.b16 %v1568, %v1564
          %v1641 = vpack.c.b16 %v1569, %v1565
          %v1642 = vpack.c.b16 %v1570, %v1566
          %v1643 = vpack.c.b16 %v1575, %v1571
          %v1644 = vpack.c.b16 %v1576, %v1572
          %v1645 = vpack.c.b16 %v1577, %v1573
          %v1646 = vpack.c.b16 %v1578, %v1574
          %v1647 = vpack.c.b16 %v1583, %v1579
          %v1648 = vpack.c.b16 %v1584, %v1580
          %v1649 = vpack.c.b16 %v1585, %v1581
          %v1650 = vpack.c.b16 %v1586, %v1582
          %1715 = vmatprep.subr.bf16.mxu0 %v1588
          %1716 = vmatpush1.bf16.msra.mxu0 %v1587
          %1717 = vmatprep.subr.bf16.mxu0 %v1592
          %1718 = vmatpush1.bf16.msra.mxu0 %v1591
          %1719 = vmatprep.subr.bf16.mxu0 %v1596
          %1720 = vmatpush1.bf16.msra.mxu0 %v1595
          %1721 = vmatprep.subr.bf16.mxu0 %v1600
          %1722 = vmatpush1.bf16.msra.mxu0 %v1599
          %1723 = vmatprep.subr.bf16.mxu0 %v1604
          %1724 = vmatpush1.bf16.msra.mxu0 %v1603
          %1725 = vmatprep.subr.bf16.mxu0 %v1608
          %1726 = vmatpush1.bf16.msra.mxu0 %v1607
          %1727 = vmatprep.subr.bf16.mxu0 %v1612
          %1728 = vmatpush1.bf16.msra.mxu0 %v1611
          %1729 = vmatprep.subr.bf16.mxu0 %v1616
          %1730 = vmatpush1.bf16.msra.mxu0 %v1615
          %1731 = vmatprep.subr.bf16.mxu0 %v1620
          %1732 = vmatpush1.bf16.msra.mxu0 %v1619
          %1733 = vmatprep.subr.bf16.mxu0 %v1624
          %1734 = vmatpush1.bf16.msra.mxu0 %v1623
          %1735 = vmatprep.subr.bf16.mxu0 %v1628
          %1736 = vmatpush1.bf16.msra.mxu0 %v1627
          %1737 = vmatprep.subr.bf16.mxu0 %v1632
          %1738 = vmatpush1.bf16.msra.mxu0 %v1631
          %1739 = vmatprep.subr.bf16.mxu0 %v1636
          %1740 = vmatpush1.bf16.msra.mxu0 %v1635
          %1741 = vmatprep.subr.bf16.mxu0 %v1640
          %1742 = vmatpush1.bf16.msra.mxu0 %v1639
          %1743 = vmatprep.subr.bf16.mxu0 %v1644
          %1744 = vmatpush1.bf16.msra.mxu0 %v1643
          %1745 = vmatprep.subr.bf16.mxu0 %v1648
          %1746 = vmatpush1.bf16.msra.mxu0 %v1647
          %1747 = vmatprep.mubr.bf16.mxu0 %v1308
          %1748 = vmatmul.mubr.bf16.gmra.mrb[0].mxu0 %v1301
          %v1749 = vpop.f32.mrb[0].mxu0
          %v1750 = vadd.f32 %v1378, %v1749
          %v1751 = vpop.f32.mrb[0].mxu0
          %v1752 = vadd.f32 %v1382, %v1751
          %v1753 = vpop.f32.mrb[0].mxu0
          %v1754 = vadd.f32 %v1378, %v1753
          %v1755 = vpop.f32.mrb[0].mxu0
          %v1756 = vadd.f32 %v1382, %v1755
          %1757 = vdwg.mxu0
          %1758 = vmatprep.subr.bf16.mxu0 %v1590
          %1759 = vmatpush1.bf16.msra.mxu0 %v1589
          %1760 = vmatprep.subr.bf16.mxu0 %v1594
          %1761 = vmatpush1.bf16.msra.mxu0 %v1593
          %1762 = vmatprep.subr.bf16.mxu0 %v1598
          %1763 = vmatpush1.bf16.msra.mxu0 %v1597
          %1764 = vmatprep.subr.bf16.mxu0 %v1602
          %1765 = vmatpush1.bf16.msra.mxu0 %v1601
          %1766 = vmatprep.subr.bf16.mxu0 %v1606
          %1767 = vmatpush1.bf16.msra.mxu0 %v1605
          %1768 = vmatprep.subr.bf16.mxu0 %v1610
          %1769 = vmatpush1.bf16.msra.mxu0 %v1609
          %1770 = vmatprep.subr.bf16.mxu0 %v1614
          %1771 = vmatpush1.bf16.msra.mxu0 %v1613
          %1772 = vmatprep.subr.bf16.mxu0 %v1618
          %1773 = vmatpush1.bf16.msra.mxu0 %v1617
          %1774 = vmatprep.subr.bf16.mxu0 %v1622
          %1775 = vmatpush1.bf16.msra.mxu0 %v1621
          %1776 = vmatprep.subr.bf16.mxu0 %v1626
          %1777 = vmatpush1.bf16.msra.mxu0 %v1625
          %1778 = vmatprep.subr.bf16.mxu0 %v1630
          %1779 = vmatpush1.bf16.msra.mxu0 %v1629
          %1780 = vmatprep.subr.bf16.mxu0 %v1634
          %1781 = vmatpush1.bf16.msra.mxu0 %v1633
          %1782 = vmatprep.subr.bf16.mxu0 %v1638
          %1783 = vmatpush1.bf16.msra.mxu0 %v1637
          %1784 = vmatprep.subr.bf16.mxu0 %v1642
          %1785 = vmatpush1.bf16.msra.mxu0 %v1641
          %1786 = vmatprep.subr.bf16.mxu0 %v1646
          %1787 = vmatpush1.bf16.msra.mxu0 %v1645
          %1788 = vmatprep.subr.bf16.mxu0 %v1650
          %1789 = vmatpush1.bf16.msra.mxu0 %v1649
          %1790 = vmatprep.mubr.bf16.mxu0 %v1308
          %1791 = vmatmul.mubr.bf16.gmra.mrb[0].mxu0 %v1301
          %v1792 = vpop.f32.mrb[0].mxu0
          %v1793 = vadd.f32 %v1386, %v1792
          %v1794 = vpop.f32.mrb[0].mxu0
          %v1795 = vadd.f32 %v1390, %v1794
          %v1796 = vpop.f32.mrb[0].mxu0
          %v1797 = vadd.f32 %v1386, %v1796
          %v1798 = vpop.f32.mrb[0].mxu0
          %v1799 = vadd.f32 %v1390, %v1798
          %1800 = vdwg.mxu0
          %v1801 = vxor.u32 %v1750, 2147483648
          %v1802 = vxor.u32 %v1754, 2147483648
          %v1803 = vmul.f32 %v1801, 1.442695
          %v1804 = vpow.pop %v1803
          %v1805 = vmul.f32 %v1802, 1.442695
          %v1806 = vpow.pop %v1805
          %v1807 = vadd.f32 %v1804, 1.0
          %v1808 = vadd.f32 %v1806, 1.0
          %v1809 = vrcp.pop %v1807
          %v1810 = vmul.f32 1.0, %v1809
          %v1811 = vrcp.pop %v1808
          %v1812 = vmul.f32 1.0, %v1811
          %v1813 = vxor.u32 %v1752, 2147483648
          %v1814 = vxor.u32 %v1756, 2147483648
          %v1815 = vmul.f32 %v1813, 1.442695
          %v1816 = vpow.pop %v1815
          %v1817 = vmul.f32 %v1814, 1.442695
          %v1818 = vpow.pop %v1817
          %v1819 = vadd.f32 %v1816, 1.0
          %v1820 = vadd.f32 %v1818, 1.0
          %v1821 = vrcp.pop %v1819
          %v1822 = vmul.f32 1.0, %v1821
          %v1823 = vrcp.pop %v1820
          %v1824 = vmul.f32 1.0, %v1823
          %v1825 = vtanh.pop %v1793
          %v1826 = vtanh.pop %v1797
          %v1827 = vxor.u32 %v1795, 2147483648
          %v1828 = vxor.u32 %v1799, 2147483648
          %v1829 = vmul.f32 %v1827, 1.442695
          %v1830 = vpow.pop %v1829
          %v1831 = vmul.f32 %v1828, 1.442695
          %v1832 = vpow.pop %v1831
          %v1833 = vadd.f32 %v1830, 1.0
          %v1834 = vadd.f32 %v1832, 1.0
          %v1835 = vrcp.pop %v1833
          %v1836 = vmul.f32 1.0, %v1835
          %v1837 = vrcp.pop %v1834
          %v1838 = vmul.f32 1.0, %v1837
          %v1839 = vmul.f32 %v1822, %v1306
          %v1840 = vmul.f32 %v1824, %v1307
          %v1841 = vmul.f32 %v1810, %v1825
          %v1842 = vmul.f32 %v1812, %v1826
          %v1843 = vadd.f32 %v1839, %v1841
          %v1844 = vadd.f32 %v1840, %v1842
          %v1845 = vtanh.pop %v1843
          %v1846 = vtanh.pop %v1844
          %v1847 = vmul.f32 %v1836, %v1845
          %v1848 = vmul.f32 %v1838, %v1846
          %1849 = vst [vmem:[%s1302] sm:$0xff] %v1847
          %1850 = vst [vmem:[%s1302 + $0x8] sm:$0xff] %v1848
          %1851 = vst [vmem:[%s1305] sm:$0xff] %v1843
          %1852 = vst [vmem:[%s1305 + $0x8] sm:$0xff] %v1844
          %v1853 = vpack.c.bf16 %v1848, %v1847
          %1854 = vst [vmem:[#allocation2] sm:$0xff] %v1853
        $region88: #{decoder_forward_multistep.1} parent=59 // pred_fallthru
          _
        %v1855 = vld [vmem:[#allocation2] sm:$0xff]
        %v1856 = vld [vmem:[%s474] sm:$0xf]
        %v1857 = vld [vmem:[%s474 + $0x4] sm:$0xf]
        %v1858 = vld [vmem:[%s474 + $0x8] sm:$0xf]
        %v1859 = vld [vmem:[%s474 + $0xc] sm:$0xf]
        %v1860 = vld [vmem:[%s474 + $0x10] sm:$0xf]
        %v1861 = vld [vmem:[%s474 + $0x14] sm:$0xf]
        %v1862 = vld [vmem:[%s474 + $0x18] sm:$0xf]
        %v1863 = vld [vmem:[%s474 + $0x1c] sm:$0xf]
        %v1864 = vld [vmem:[%s474 + $0x20] sm:$0xf]
        %v1865 = vld [vmem:[%s474 + $0x24] sm:$0xf]
        %v1866 = vld [vmem:[%s474 + $0x28] sm:$0xf]
        %v1867 = vld [vmem:[%s474 + $0x2c] sm:$0xf]
        %v1868 = vld [vmem:[%s474 + $0x30] sm:$0xf]
        %v1869 = vld [vmem:[%s474 + $0x34] sm:$0xf]
        %v1870 = vld [vmem:[%s474 + $0x38] sm:$0xf]
        %v1871 = vld [vmem:[%s474 + $0x3c] sm:$0xf]
        %v1872 = vld [vmem:[%s530] sm:$0x1]
        %v1874 = vlaneseq
        %v1875 = vshrl.u32 %v1874, 7
        %v1876 = vsub.s32 0, %v1875
        %v1877 = vrot.slane %v1872, %v1876
        %v1895 = vunpack.c.l.b16 %v1856
        %v1896 = vunpack.c.l.b16 %v1857
        %v1897 = vunpack.c.l.b16 %v1858
        %v1898 = vunpack.c.l.b16 %v1859
        %v1899 = vunpack.c.l.b16 %v1860
        %v1900 = vunpack.c.l.b16 %v1861
        %v1901 = vunpack.c.l.b16 %v1862
        %v1902 = vunpack.c.l.b16 %v1863
        %v1903 = vunpack.c.l.b16 %v1864
        %v1904 = vunpack.c.l.b16 %v1865
        %v1905 = vunpack.c.l.b16 %v1866
        %v1906 = vunpack.c.l.b16 %v1867
        %v1907 = vunpack.c.l.b16 %v1868
        %v1908 = vunpack.c.l.b16 %v1869
        %v1909 = vunpack.c.l.b16 %v1870
        %v1910 = vunpack.c.l.b16 %v1871
        %v1911 = vpack.c.b16 %v1896, %v1895
        %v1912 = vpack.c.b16 %v1898, %v1897
        %v1913 = vpack.c.b16 %v1900, %v1899
        %v1914 = vpack.c.b16 %v1902, %v1901
        %v1915 = vpack.c.b16 %v1904, %v1903
        %v1916 = vpack.c.b16 %v1906, %v1905
        %v1917 = vpack.c.b16 %v1908, %v1907
        %v1918 = vpack.c.b16 %v1910, %v1909
        %1927 = vmatprep.subr.bf16.mxu0 0
        %1928 = vmatpush1.bf16.msra.mxu0 %v1911
        %1929 = vmatprep.subr.bf16.mxu0 0
        %1930 = vmatpush1.bf16.msra.mxu0 %v1912
        %1931 = vmatprep.subr.bf16.mxu0 0
        %1932 = vmatpush1.bf16.msra.mxu0 %v1913
        %1933 = vmatprep.subr.bf16.mxu0 0
        %1934 = vmatpush1.bf16.msra.mxu0 %v1914
        %1935 = vmatprep.subr.bf16.mxu0 0
        %1936 = vmatpush1.bf16.msra.mxu0 %v1915
        %1937 = vmatprep.subr.bf16.mxu0 0
        %1938 = vmatpush1.bf16.msra.mxu0 %v1916
        %1939 = vmatprep.subr.bf16.mxu0 0
        %1940 = vmatpush1.bf16.msra.mxu0 %v1917
        %1941 = vmatprep.subr.bf16.mxu0 0
        %1942 = vmatpush1.bf16.msra.mxu0 %v1918
        %1943 = vmatprep.subr.bf16.mxu0 0
        %1944 = vmatpush1.bf16.msra.mxu0 0
        %1945 = vmatprep.subr.bf16.mxu0 0
        %1946 = vmatpush1.bf16.msra.mxu0 0
        %1947 = vmatprep.subr.bf16.mxu0 0
        %1948 = vmatpush1.bf16.msra.mxu0 0
        %1949 = vmatprep.subr.bf16.mxu0 0
        %1950 = vmatpush1.bf16.msra.mxu0 0
        %1951 = vmatprep.subr.bf16.mxu0 0
        %1952 = vmatpush1.bf16.msra.mxu0 0
        %1953 = vmatprep.subr.bf16.mxu0 0
        %1954 = vmatpush1.bf16.msra.mxu0 0
        %1955 = vmatprep.subr.bf16.mxu0 0
        %1956 = vmatpush1.bf16.msra.mxu0 0
        %1957 = vmatprep.subr.bf16.mxu0 0
        %1958 = vmatpush1.bf16.msra.mxu0 0
        %1959 = vmatprep.mubr.bf16.mxu0 0
        %1960 = vmatmul.mubr.bf16.gmra.mrb[0].mxu0 %v1855
        %v1961 = vpop.f32.mrb[0].mxu0
        %v1962 = vadd.f32 %v1877, %v1961
        %v1963 = vpop.f32.mrb[0].mxu0
        %v1964 = vpop.f32.mrb[0].mxu0
        %v1965 = vadd.f32 %v1877, %v1964
        %v1966 = vpop.f32.mrb[0].mxu0
        %1967 = vdwg.mxu0
        %1968 = vst [vmem:[%s518] sm:$0xff] %v1962
        %1969 = vst [vmem:[%s518 + $0x8] sm:$0xff] %v1965
        %s1970 = sand.u32 %s278, 1
        %s1971 = scalar_lea.sflag [#allocation5], %s1970
        %s1972 = sand.u32 %s278, 1
        %s1973 = smul.addr %s1972, 16
        %s1974 = scalar_lea.vmem [#allocation12], %s1973
        // Predicated region
        $region89: #{decoder_forward_multistep.1} parent=59 // pred_check
          %p1975 = pneg %p288
        $region90: #{decoder_forward_multistep.1} parent=59 // pred_check_branch
          %1977 = sbr.rel (%p1975) target = $region92
        $region91: #{decoder_forward_multistep.1} parent=59 // pred_region
          %s1979 = ssub.s32 256, 256
          %1980 = vsyncadd %s1971, %s1979
          %s1981 = smul.addr %s35, 4
          %s1982 = sadd.s32 %s36, %s1981
          %s1983 = smul.addr %s1982, 128
          %s1984 = scalar_lea.hbm %s10, %s1983
          %s1985 = sshll.u32 %s1974, 4
          %s1986 = int_to_ptr.vmem [resolvable:$true] %s1985
          %1991 = dma.vmem_to_hbm [thread:$0]  %s1986, 256, %s1984, %s1971, 128, 256, 8
        $region92: #{decoder_forward_multistep.1} parent=59 // pred_fallthru
          _
        // Predicated region
        $region93: #{decoder_forward_multistep.1} parent=59 // pred_check
          %p1992 = pneg %p309
        $region94: #{decoder_forward_multistep.1} parent=59 // pred_check_branch
          %1994 = sbr.rel (%p1992) target = $region96
        $region95: #{decoder_forward_multistep.1} parent=59 // pred_region
          %s1996 = ssub.s32 512, 512
          %1997 = vsyncadd [#allocation14], %s1996
          %s1998 = sshll.u32 [#allocation13], 4
          %s1999 = int_to_ptr.vmem [resolvable:$true] %s1998
          %2004 = dma.vmem_to_hbm [thread:$0]  %s1999, 512, %s11, [#allocation14], 128, 128, 8
        $region96: #{decoder_forward_multistep.1} parent=59 // pred_fallthru
          _
        // Predicated region
        $region97: #{decoder_forward_multistep.1} parent=59 // pred_check
          %p2005 = pneg %p330
        $region98: #{decoder_forward_multistep.1} parent=59 // pred_check_branch
          %2007 = sbr.rel (%p2005) target = $region100
        $region99: #{decoder_forward_multistep.1} parent=59 // pred_region
          %s2009 = ssub.s32 512, 512
          %2010 = vsyncadd [#allocation14], %s2009
          %s2011 = sshll.u32 [#allocation15], 4
          %s2012 = int_to_ptr.vmem [resolvable:$true] %s2011
          %2017 = dma.vmem_to_hbm [thread:$0]  %s2012, 512, %s12, [#allocation14], 128, 128, 8
        $region100: #{decoder_forward_multistep.1} parent=59 // pred_fallthru
          _
        // Predicated region
        $region101: #{decoder_forward_multistep.1} parent=59 // pred_check
          %p2018 = pneg %p309
        $region102: #{decoder_forward_multistep.1} parent=59 // pred_check_branch
          %2020 = sbr.rel (%p2018) target = $region104
        $region103: #{decoder_forward_multistep.1} parent=59 // pred_region
          %2021 = dma.done [#allocation14], 512
        $region104: #{decoder_forward_multistep.1} parent=59 // pred_fallthru
          _
        // Predicated region
        $region105: #{decoder_forward_multistep.1} parent=59 // pred_check
          %p2022 = pneg %p330
        $region106: #{decoder_forward_multistep.1} parent=59 // pred_check_branch
          %2024 = sbr.rel (%p2022) target = $region108
        $region107: #{decoder_forward_multistep.1} parent=59 // pred_region
          %2025 = dma.done [#allocation14], 512
        $region108: #{decoder_forward_multistep.1} parent=59 // pred_fallthru
          _
      $region60: #{decoder_forward_multistep.1} parent=5 // pred_fallthru
        _
      %p2026 = scmp.le.s32.totalorder 2, %s26
      // Predicated region
      $region109: #{decoder_forward_multistep.1} parent=5 // pred_check
        %p2027 = pneg %p2026
      $region110: #{decoder_forward_multistep.1} parent=5 // pred_check_branch
        %2029 = sbr.rel (%p2027) target = $region112
      $region111: #{decoder_forward_multistep.1} parent=5 // pred_region
        %s2030 = ssub.s32 %s26, 2
        // Predicated region
        $region113: #{decoder_forward_multistep.1} parent=111 // pred_check
          %p2031 = pneg %p294
        $region114: #{decoder_forward_multistep.1} parent=111 // pred_check_branch
          %2033 = sbr.rel (%p2031) target = $region116
        $region115: #{decoder_forward_multistep.1} parent=111 // pred_region
          %s2034 = sand.u32 %s279, 1
          %s2035 = scalar_lea.sflag [#allocation5], %s2034
          %s2036 = sand.u32 %s279, 1
          %s2037 = smul.addr %s2036, 16
          %s2038 = scalar_lea.vmem [#allocation12], %s2037
          %2039 = dma.done %s2035, 256
        $region116: #{decoder_forward_multistep.1} parent=111 // pred_fallthru
          _
      $region112: #{decoder_forward_multistep.1} parent=5 // pred_fallthru
        _
    $region6: #{decoder_forward_multistep.1} parent=1 // loop_footer
      %s30 = sadd.s32 1, %s26
    $region7: #{decoder_forward_multistep.1} parent=1 // loop_footer_branch
      %25 = sbr.rel target = $region3
    $region8: #{decoder_forward_multistep.1} parent=1 // loop_exit
      _
    %2040 = vsyncpa [#allocation4], 1
    %s2041 = scalar_lea.sflag [#allocation4], 1
    %2042 = vsyncpa %s2041, 1
    %2043 = vsyncpa [#allocation7], 1
    %2044 = vsyncpa [#allocation10], 1
    %2045 = vsyncpa [#allocation5], 1
    %s2046 = scalar_lea.sflag [#allocation5], 1
    %2047 = vsyncpa %s2046, 1
    %2048 = vsyncpa [#allocation14], 1

</llo_original>
